<compile_context>
chip_gen: v7x
topology: tpu7x:2x2x1
jax: 0.10.0
libtpu: 0.0.40
codegen_flags: <defaults>
</compile_context>

<pallas_src>
import functools
import math

import jax
import jax.numpy as jnp
from jax.experimental import pallas as pl
from jax.experimental.pallas import tpu as pltpu

_LN_EPS = 1e-5
_NEG_INF = -1e30


# ----------------------------------------------------------------------------
# shared math helpers (used by both the kernels and the pure-JAX reference)
# ----------------------------------------------------------------------------
def _layernorm_f32(x, gamma, beta):
    mean = jnp.mean(x, axis=-1, keepdims=True)
    var = jnp.mean(jnp.square(x - mean), axis=-1, keepdims=True)
    return (x - mean) * gamma * jax.lax.rsqrt(var + _LN_EPS) + beta


def _gelu_tanh(x):
    c = math.sqrt(2.0 / math.pi)
    return 0.5 * x * (1.0 + jnp.tanh(c * (x + 0.044715 * x * x * x)))


def _sublane_quantum(dtype):
    # bf16 packs 16 rows per vreg -> keep token tiles multiples of 16.
    return 16 if jnp.dtype(dtype).itemsize == 2 else 8


def _pick_tile(dim, preferred, quantum):
    t = min(preferred, dim)
    t -= t % quantum
    while t >= quantum:
        if dim % t == 0:
            return t
        t -= quantum
    return dim


_VMEM_LIMIT_CACHE = None


def _vmem_limit_bytes():
    """Scoped-VMEM limit per chip generation (conservative on 64-MiB v7x)."""
    global _VMEM_LIMIT_CACHE
    if _VMEM_LIMIT_CACHE is None:
        try:
            cap = int(pltpu.get_tpu_info().vmem_capacity_bytes)
        except Exception:
            cap = 64 * 1024 * 1024
        _VMEM_LIMIT_CACHE = (96 * 1024 * 1024 if cap >= 128 * 1024 * 1024
                             else 40 * 1024 * 1024)
    return _VMEM_LIMIT_CACHE


# ----------------------------------------------------------------------------
# Kernel 1: AttentionSublayer  (LayerNorm + causal MHA + residual)
#   grid = (batch "parallel", q-tiles "arbitrary"); K/V projected once per
#   batch element (at q==0) into VMEM scratch and reused by every q tile.
# ----------------------------------------------------------------------------
def attn_sublayer_kernel(x_full_ref, x_q_ref, g_ref, b_ref,
                         wq_ref, wkv_ref, wo_ref, o_ref,
                         k_scr, v_scr, *, num_heads):
    qi = pl.program_id(1)
    S, D = x_full_ref.shape[1], x_full_ref.shape[2]
    tq = x_q_ref.shape[1]
    hs = D // num_heads
    cdt = wq_ref.dtype
    sm_scale = 1.0 / math.sqrt(hs)

    @pl.when(qi == 0)
    def _project_kv():
        xn = _layernorm_f32(x_full_ref[0].astype(jnp.float32),
                            g_ref[...], b_ref[...])
        kv = jnp.dot(xn.astype(cdt), wkv_ref[...],
                     preferred_element_type=cdt)            # (S, 2D), lane-dense
        k_scr[...] = kv[:, :D]
        v_scr[...] = kv[:, D:]

    # q projection for this tile; 1/sqrt(hs) folded into the operand.
    xq = _layernorm_f32(x_q_ref[0].astype(jnp.float32), g_ref[...], b_ref[...])
    q = jnp.dot((xq * sm_scale).astype(cdt), wq_ref[...],
                preferred_element_type=cdt)                 # (tq, D)

    qh = jnp.transpose(q.reshape(tq, num_heads, hs), (1, 0, 2))          # (H,tq,hs)
    kh = jnp.transpose(k_scr[...].reshape(S, num_heads, hs), (1, 0, 2))  # (H,S,hs)
    vh = jnp.transpose(v_scr[...].reshape(S, num_heads, hs), (1, 0, 2))  # (H,S,hs)

    scores = jnp.einsum('hqc,hkc->hqk', qh, kh,
                        preferred_element_type=jnp.float32)              # (H,tq,S)
    q_pos = qi * tq + jax.lax.broadcasted_iota(jnp.int32, (tq, S), 0)
    k_pos = jax.lax.broadcasted_iota(jnp.int32, (tq, S), 1)
    scores = jnp.where((q_pos >= k_pos)[None], scores, _NEG_INF)

    m = jnp.max(scores, axis=-1, keepdims=True)
    e = jnp.exp(scores - m)
    w = e * pl.reciprocal(jnp.sum(e, axis=-1, keepdims=True), approx=True)

    ctx = jnp.einsum('hqk,hkc->hqc', w.astype(cdt), vh,
                     preferred_element_type=jnp.float32)                 # (H,tq,hs)
    ctx_flat = jnp.transpose(ctx, (1, 0, 2)).reshape(tq, D)
    proj = jnp.dot(ctx_flat.astype(cdt), wo_ref[...],
                   preferred_element_type=jnp.float32)
    o_ref[0] = (x_q_ref[0].astype(jnp.float32) + proj).astype(o_ref.dtype)


def attention_sublayer(x, ln_g, ln_b, wq_f, wkv_f, wo, *, num_heads,
                       block_q=None):
    B, S, D = x.shape
    cdt = wq_f.dtype
    tq = block_q or _pick_tile(S, 256, _sublane_quantum(x.dtype))
    kernel = functools.partial(attn_sublayer_kernel, num_heads=num_heads)
    return pl.pallas_call(
        kernel,
        out_shape=jax.ShapeDtypeStruct((B, S, D), x.dtype),
        grid_spec=pltpu.PrefetchScalarGridSpec(
            num_scalar_prefetch=0,
            grid=(B, S // tq),
            in_specs=[
                pl.BlockSpec((1, S, D), lambda b, q: (b, 0, 0)),    # full x (K/V)
                pl.BlockSpec((1, tq, D), lambda b, q: (b, q, 0)),   # q tile of x
                pl.BlockSpec((1, D), lambda b, q: (0, 0)),          # LN gamma
                pl.BlockSpec((1, D), lambda b, q: (0, 0)),          # LN beta
                pl.BlockSpec((D, D), lambda b, q: (0, 0)),          # fused Wq
                pl.BlockSpec((D, 2 * D), lambda b, q: (0, 0)),      # fused Wk|Wv
                pl.BlockSpec((D, D), lambda b, q: (0, 0)),          # Wo
            ],
            out_specs=pl.BlockSpec((1, tq, D), lambda b, q: (b, q, 0)),
            scratch_shapes=[pltpu.VMEM((S, D), cdt),                # K cache
                            pltpu.VMEM((S, D), cdt)],               # V cache
        ),
        compiler_params=pltpu.CompilerParams(
            dimension_semantics=("parallel", "arbitrary"),
            vmem_limit_bytes=_vmem_limit_bytes()),
    )(x, x, ln_g, ln_b, wq_f, wkv_f, wo)


# ----------------------------------------------------------------------------
# Kernel 2: FullyConnectedSublayer  (LayerNorm + Linear/GELU/Linear + residual)
#   grid = (token tiles "parallel", ffn tiles "arbitrary" -- reduction last),
#   f32 accumulator zeroed at f==0 and written at f==last; LN(x) cached in
#   the compute dtype so it is neither recomputed nor recast per ffn tile.
# ----------------------------------------------------------------------------
def ffn_sublayer_kernel(x_ref, g_ref, b_ref, w1_ref, b1_ref, w2_ref, b2_ref,
                        o_ref, xn_ref, acc_ref):
    f = pl.program_id(1)

    @pl.when(f == 0)
    def _init():
        xf = x_ref[...].astype(jnp.float32)
        xn_ref[...] = _layernorm_f32(xf, g_ref[...], b_ref[...]).astype(
            xn_ref.dtype)
        acc_ref[...] = jnp.zeros_like(acc_ref)

    h = jnp.dot(xn_ref[...], w1_ref[...], preferred_element_type=jnp.float32)
    h = _gelu_tanh(h + b1_ref[...])
    acc_ref[...] += jnp.dot(h.astype(w2_ref.dtype), w2_ref[...],
                            preferred_element_type=jnp.float32)

    @pl.when(f == pl.num_programs(1) - 1)
    def _finish():
        o_ref[...] = (x_ref[...].astype(jnp.float32) + acc_ref[...]
                      + b2_ref[...]).astype(o_ref.dtype)


def ffn_sublayer(x2d, ln_g, ln_b, w1, b1, w2, b2, *,
                 block_tokens=None, block_ff=None):
    T, D = x2d.shape
    F = w1.shape[1]
    cdt = w1.dtype
    # Large token tiles minimize how many times w1/w2 are re-streamed from HBM.
    tm = block_tokens or _pick_tile(T, 512, _sublane_quantum(x2d.dtype))
    tf = block_ff or _pick_tile(F, 512, 128)
    return pl.pallas_call(
        ffn_sublayer_kernel,
        out_shape=jax.ShapeDtypeStruct((T, D), x2d.dtype),
        grid_spec=pltpu.PrefetchScalarGridSpec(
            num_scalar_prefetch=0,
            grid=(T // tm, F // tf),
            in_specs=[
                pl.BlockSpec((tm, D), lambda t, f: (t, 0)),   # x tile
                pl.BlockSpec((1, D), lambda t, f: (0, 0)),    # LN gamma
                pl.BlockSpec((1, D), lambda t, f: (0, 0)),    # LN beta
                pl.BlockSpec((D, tf), lambda t, f: (0, f)),   # w1 tile
                pl.BlockSpec((1, tf), lambda t, f: (0, f)),   # b1 tile
                pl.BlockSpec((tf, D), lambda t, f: (f, 0)),   # w2 tile
                pl.BlockSpec((1, D), lambda t, f: (0, 0)),    # b2
            ],
            out_specs=pl.BlockSpec((tm, D), lambda t, f: (t, 0)),
            scratch_shapes=[pltpu.VMEM((tm, D), cdt),          # LN(x) cache
                            pltpu.VMEM((tm, D), jnp.float32)], # f32 accumulator
        ),
        compiler_params=pltpu.CompilerParams(
            dimension_semantics=("parallel", "arbitrary"),
            vmem_limit_bytes=_vmem_limit_bytes()),
    )(x2d, ln_g, ln_b, w1, b1, w2, b2)


# ----------------------------------------------------------------------------
# Kernel 3: final LayerNorm + de-embedding Linear (no bias)
#   LN(x) of each token tile is computed once (v==0) and cached; the vocab
#   axis is "arbitrary" so the cache is valid under megacore sharding.
# ----------------------------------------------------------------------------
def lm_head_kernel(x_ref, g_ref, b_ref, w_ref, o_ref, xn_ref):
    @pl.when(pl.program_id(1) == 0)
    def _ln():
        xn_ref[...] = _layernorm_f32(x_ref[...].astype(jnp.float32),
                                     g_ref[...], b_ref[...]).astype(xn_ref.dtype)
    o_ref[...] = jnp.dot(xn_ref[...], w_ref[...],
                         preferred_element_type=jnp.float32).astype(o_ref.dtype)


def lm_head(x2d, ln_g, ln_b, w_de, *, block_tokens=None, block_vocab=None):
    T, D = x2d.shape
    V = w_de.shape[1]
    cdt = w_de.dtype
    tm = block_tokens or _pick_tile(T, 512, _sublane_quantum(x2d.dtype))
    tv = block_vocab or _pick_tile(V, 1024, 128)
    # TODO(synk): emit bf16 logits (or fuse the softmax consumer) to halve the
    # dominant T x V HBM write when the downstream allows it.
    return pl.pallas_call(
        lm_head_kernel,
        out_shape=jax.ShapeDtypeStruct((T, V), jnp.float32),
        grid_spec=pltpu.PrefetchScalarGridSpec(
            num_scalar_prefetch=0,
            grid=(T // tm, V // tv),
            in_specs=[
                pl.BlockSpec((tm, D), lambda t, v: (t, 0)),
                pl.BlockSpec((1, D), lambda t, v: (0, 0)),
                pl.BlockSpec((1, D), lambda t, v: (0, 0)),
                pl.BlockSpec((D, tv), lambda t, v: (0, v)),
            ],
            out_specs=pl.BlockSpec((tm, tv), lambda t, v: (t, v)),
            scratch_shapes=[pltpu.VMEM((tm, D), cdt)],         # LN(x) cache
        ),
        compiler_params=pltpu.CompilerParams(
            dimension_semantics=("parallel", "arbitrary"),
            vmem_limit_bytes=_vmem_limit_bytes()),
    )(x2d, ln_g, ln_b, w_de)


# ----------------------------------------------------------------------------
# Parameter preparation: fuse per-head projections + cast weights ONCE.
# ----------------------------------------------------------------------------
def prepare_params(params, compute_dtype=jnp.float32):
    cdt = compute_dtype
    layers = []
    num_heads = None
    for lp in params["layers"]:
        nH, D, hs = lp["wq"].shape
        num_heads = nH

        def fuse(w):  # (nH, D, hs) -> (D, nH*hs), head-major columns
            return jnp.transpose(w, (1, 0, 2)).reshape(D, nH * hs).astype(cdt)

        wk_f, wv_f = fuse(lp["wk"]), fuse(lp["wv"])
        layers.append(dict(
            ln1_g=lp["ln1_g"].reshape(1, D), ln1_b=lp["ln1_b"].reshape(1, D),
            wq=fuse(lp["wq"]),
            wkv=jnp.concatenate([wk_f, wv_f], axis=-1),
            wo=lp["wo"].astype(cdt),
            ln2_g=lp["ln2_g"].reshape(1, D), ln2_b=lp["ln2_b"].reshape(1, D),
            w1=lp["w1"].astype(cdt), b1=lp["b1"].reshape(1, -1),
            w2=lp["w2"].astype(cdt), b2=lp["b2"].reshape(1, D),
        ))
    D = params["embed"].shape[1]
    return dict(
        embed=params["embed"], pe=params["pe"], layers=layers,
        num_heads=num_heads,
        lnf_g=params["lnf_g"].reshape(1, D), lnf_b=params["lnf_b"].reshape(1, D),
        w_de=params["w_de"].astype(cdt), compute_dtype=cdt)


# ----------------------------------------------------------------------------
# Full Transformer forward (Pallas kernels glued together)
# ----------------------------------------------------------------------------
def transformer_forward(ids, prepped, *, block_q=None, block_tokens=None,
                        block_ff=None, block_vocab=None):
    cdt = prepped["compute_dtype"]
    B, S = ids.shape
    D = prepped["embed"].shape[1]
    # TODO(synk): embedding row gather + positional-encoding add left to XLA;
    # a per-token DMA-gather Pallas kernel is not worth it at these sizes.
    x = (prepped["embed"][ids] + prepped["pe"][:S]).astype(cdt)

    for lp in prepped["layers"]:
        x = attention_sublayer(x, lp["ln1_g"], lp["ln1_b"],
                               lp["wq"], lp["wkv"], lp["wo"],
                               num_heads=prepped["num_heads"], block_q=block_q)
        y = ffn_sublayer(x.reshape(B * S, D), lp["ln2_g"], lp["ln2_b"],
                         lp["w1"], lp["b1"], lp["w2"], lp["b2"],
                         block_tokens=block_tokens, block_ff=block_ff)
        x = y.reshape(B, S, D)

    logits = lm_head(x.reshape(B * S, D), prepped["lnf_g"], prepped["lnf_b"],
                     prepped["w_de"], block_tokens=block_tokens,
                     block_vocab=block_vocab)
    return logits.reshape(B, S, -1)


# ----------------------------------------------------------------------------
# Parameters (same init distributions / shapes as the PyTorch module)
# ----------------------------------------------------------------------------
def init_params(key, vocab, d_model, num_heads, num_layers, d_ff,
                max_words, n_pe):
    hs = d_model // num_heads
    kq = 1.0 / math.sqrt(d_model)
    kf = 1.0 / math.sqrt(d_ff)
    keys = jax.random.split(key, 2 + num_layers)

    pos = jnp.arange(max_words, dtype=jnp.float32)[:, None]
    idx = jnp.arange(0, d_model, 2, dtype=jnp.float32)
    arg = pos / (n_pe ** (idx / d_model))
    pe = jnp.zeros((max_words, d_model), jnp.float32)
    pe = pe.at[:, 0::2].set(jnp.sin(arg)).at[:, 1::2].set(jnp.cos(arg))

    layers = []
    for i in range(num_layers):
        lk = jax.random.split(keys[2 + i], 8)
        layers.append(dict(
            ln1_g=jnp.ones((d_model,), jnp.float32),
            ln1_b=jnp.zeros((d_model,), jnp.float32),
            wq=jax.random.uniform(lk[0], (num_heads, d_model, hs),
                                  jnp.float32, minval=-kq, maxval=kq),
            wk=jax.random.uniform(lk[1], (num_heads, d_model, hs),
                                  jnp.float32, minval=-kq, maxval=kq),
            wv=jax.random.uniform(lk[2], (num_heads, d_model, hs),
                                  jnp.float32, minval=-kq, maxval=kq),
            wo=jax.random.uniform(lk[3], (d_model, d_model),
                                  jnp.float32, minval=-kq, maxval=kq),
            ln2_g=jnp.ones((d_model,), jnp.float32),
            ln2_b=jnp.zeros((d_model,), jnp.float32),
            w1=jax.random.uniform(lk[4], (d_model, d_ff),
                                  jnp.float32, minval=-kq, maxval=kq),
            b1=jax.random.uniform(lk[5], (d_ff,),
                                  jnp.float32, minval=-kq, maxval=kq),
            w2=jax.random.uniform(lk[6], (d_ff, d_model),
                                  jnp.float32, minval=-kf, maxval=kf),
            b2=jax.random.uniform(lk[7], (d_model,),
                                  jnp.float32, minval=-kf, maxval=kf),
        ))
    return dict(
        embed=jax.random.normal(keys[0], (vocab, d_model), jnp.float32),
        pe=pe,
        layers=layers,
        lnf_g=jnp.ones((d_model,), jnp.float32),
        lnf_b=jnp.zeros((d_model,), jnp.float32),
        w_de=jax.random.uniform(keys[1], (d_model, vocab),
                                jnp.float32, minval=-kq, maxval=kq),
    )


# ----------------------------------------------------------------------------
# Pure-JAX reference (mirrors the PyTorch module, per-head weights)
# ----------------------------------------------------------------------------
def reference_forward(ids, params, compute_dtype):
    cdt = compute_dtype
    f32 = jnp.float32
    B, S = ids.shape
    x = (params["embed"][ids] + params["pe"][:S]).astype(cdt)

    for lp in params["layers"]:
        # attention sublayer
        xf = x.astype(f32)
        xn = _layernorm_f32(xf, lp["ln1_g"], lp["ln1_b"])
        xh = xn.astype(cdt)
        wq, wk, wv = (lp[n].astype(cdt) for n in ("wq", "wk", "wv"))
        hs = wq.shape[-1]
        q = jnp.einsum('bsd,hdk->bhsk', xh, wq, preferred_element_type=cdt)
        k = jnp.einsum('bsd,hdk->bhsk', xh, wk, preferred_element_type=cdt)
        v = jnp.einsum('bsd,hdk->bhsk', xh, wv, preferred_element_type=cdt)
        scores = jnp.einsum('bhqc,bhkc->bhqk', q, k,
                            preferred_element_type=f32) / math.sqrt(hs)
        causal = jnp.tril(jnp.ones((S, S), bool))
        scores = jnp.where(causal[None, None], scores, _NEG_INF)
        m = jnp.max(scores, axis=-1, keepdims=True)
        e = jnp.exp(scores - m)
        w = e / jnp.sum(e, axis=-1, keepdims=True)
        ctx = jnp.einsum('bhqk,bhkc->bqhc', w.astype(cdt), v,
                         preferred_element_type=f32)
        ctx = ctx.reshape(B, S, -1)
        proj = jnp.einsum('bsd,de->bse', ctx.astype(cdt), lp["wo"].astype(cdt),
                          preferred_element_type=f32)
        x = (xf + proj).astype(cdt)

        # feed-forward sublayer
        xf = x.astype(f32)
        xn = _layernorm_f32(xf, lp["ln2_g"], lp["ln2_b"])
        h = jnp.einsum('bsd,df->bsf', xn.astype(cdt), lp["w1"].astype(cdt),
                       preferred_element_type=f32) + lp["b1"]
        h = _gelu_tanh(h)
        ffn = jnp.einsum('bsf,fd->bsd', h.astype(cdt), lp["w2"].astype(cdt),
                         preferred_element_type=f32) + lp["b2"]
        x = (xf + ffn).astype(cdt)

    xf = x.astype(f32)
    xn = _layernorm_f32(xf, params["lnf_g"], params["lnf_b"])
    return jnp.einsum('bsd,dv->bsv', xn.astype(cdt),
                      params["w_de"].astype(cdt), preferred_element_type=f32)


# ----------------------------------------------------------------------------
if __name__ == "__main__":
    VOCAB, N_PE, D_MODEL, N_HEADS, N_STACKS, D_FF = 256, 10000, 128, 4, 2, 512
    B, S = 2, 16
    MAX_WORDS = 64
    # f32 for this correctness check (the interpret/CPU fallback path does not
    # support bf16 x bf16 -> f32 dots); use jnp.bfloat16 on real TPUs.
    cdt = jnp.float32

    key = jax.random.PRNGKey(0)
    k_ids, k_params = jax.random.split(key)
    params = init_params(k_params, VOCAB, D_MODEL, N_HEADS, N_STACKS, D_FF,
                         MAX_WORDS, N_PE)
    ids = jax.random.randint(k_ids, (B, S), 0, VOCAB)

    prepped = prepare_params(params, compute_dtype=cdt)
    # Small tiles chosen so the multi-tile paths (q tiles, token tiles,
    # ffn-accumulator tiles, vocab tiles) are all exercised.
    out = transformer_forward(ids, prepped, block_q=8, block_tokens=16,
                              block_ff=256, block_vocab=128)
    out = jax.block_until_ready(out)
    assert out.shape == (B, S, VOCAB)

    ref = reference_forward(ids, params, cdt)
    max_diff = float(jnp.max(jnp.abs(out - ref)))
    assert max_diff < 2e-2, "mismatch vs reference: max abs diff %e" % max_diff

    print("KERNEL_OK")
</pallas_src>

<mosaic_0001>
module attributes {stable_mosaic.version = 11 : i64} {
  func.func @attn_sublayer_kernel(%arg0: i32, %arg1: i32, %arg2: memref<1x16x128xf32, #tpu.memory_space<vmem>>, %arg3: memref<1x8x128xf32, #tpu.memory_space<vmem>>, %arg4: memref<1x128xf32, #tpu.memory_space<vmem>>, %arg5: memref<1x128xf32, #tpu.memory_space<vmem>>, %arg6: memref<128x128xf32, #tpu.memory_space<vmem>>, %arg7: memref<128x256xf32, #tpu.memory_space<vmem>>, %arg8: memref<128x128xf32, #tpu.memory_space<vmem>>, %arg9: memref<1x8x128xf32, #tpu.memory_space<vmem>>, %arg10: memref<16x128xf32, #tpu.memory_space<vmem>>, %arg11: memref<16x128xf32, #tpu.memory_space<vmem>>) attributes {dimension_semantics = [#tpu.dimension_semantics<parallel>, #tpu.dimension_semantics<arbitrary>], iteration_bounds = array<i64: 2, 2>, scalar_prefetch = 0 : i64, scratch_operands = 2 : i64, tpu.core_type = #tpu.core_type<tc>, window_params = [{transform_indices = @transform_0, window_bounds = array<i64: 1, 16, 128>}, {transform_indices = @transform_1, window_bounds = array<i64: 1, 8, 128>}, {pipeline_mode = #tpu.pipeline_mode<synchronous>, transform_indices = @transform_2, window_bounds = array<i64: 1, 128>}, {pipeline_mode = #tpu.pipeline_mode<synchronous>, transform_indices = @transform_3, window_bounds = array<i64: 1, 128>}, {pipeline_mode = #tpu.pipeline_mode<synchronous>, transform_indices = @transform_4, window_bounds = array<i64: 128, 128>}, {pipeline_mode = #tpu.pipeline_mode<synchronous>, transform_indices = @transform_5, window_bounds = array<i64: 128, 256>}, {pipeline_mode = #tpu.pipeline_mode<synchronous>, transform_indices = @transform_6, window_bounds = array<i64: 128, 128>}, {transform_indices = @transform_7, window_bounds = array<i64: 1, 8, 128>}]} {
    %c0_i32 = arith.constant 0 : i32
    %0 = arith.cmpi eq, %arg1, %c0_i32 : i32
    %1 = arith.extui %0 : i1 to i32
    %c0_i32_0 = arith.constant 0 : i32
    %2 = arith.cmpi ne, %1, %c0_i32_0 : i32
    scf.if %2 {
      %c0_33 = arith.constant 0 : index
      %c0_34 = arith.constant 0 : index
      %c0_35 = arith.constant 0 : index
      %74 = vector.load %arg2[%c0_33, %c0_34, %c0_35] : memref<1x16x128xf32, #tpu.memory_space<vmem>>, vector<1x16x128xf32>
      %75 = vector.shape_cast %74 : vector<1x16x128xf32> to vector<16x128xf32>
      %c0_36 = arith.constant 0 : index
      %c0_37 = arith.constant 0 : index
      %76 = vector.load %arg4[%c0_36, %c0_37] : memref<1x128xf32, #tpu.memory_space<vmem>>, vector<1x128xf32>
      %c0_38 = arith.constant 0 : index
      %c0_39 = arith.constant 0 : index
      %77 = vector.load %arg5[%c0_38, %c0_39] : memref<1x128xf32, #tpu.memory_space<vmem>>, vector<1x128xf32>
      %cst_40 = arith.constant dense<0.000000e+00> : vector<16xf32>
      %78 = vector.multi_reduction <add>, %75, %cst_40 [1] : vector<16x128xf32> to vector<16xf32>
      %79 = vector.shape_cast %78 : vector<16xf32> to vector<16x1xf32>
      %cst_41 = arith.constant 1.280000e+02 : f32
      %80 = vector.broadcast %cst_41 : f32 to vector<16x1xf32>
      %81 = arith.divf %79, %80 : vector<16x1xf32>
      %82 = vector.broadcast %81 : vector<16x1xf32> to vector<16x128xf32>
      %83 = arith.subf %75, %82 : vector<16x128xf32>
      %84 = arith.mulf %83, %83 : vector<16x128xf32>
      %cst_42 = arith.constant dense<0.000000e+00> : vector<16xf32>
      %85 = vector.multi_reduction <add>, %84, %cst_42 [1] : vector<16x128xf32> to vector<16xf32>
      %86 = vector.shape_cast %85 : vector<16xf32> to vector<16x1xf32>
      %cst_43 = arith.constant 1.280000e+02 : f32
      %87 = vector.broadcast %cst_43 : f32 to vector<16x1xf32>
      %88 = arith.divf %86, %87 : vector<16x1xf32>
      %89 = vector.broadcast %81 : vector<16x1xf32> to vector<16x128xf32>
      %90 = arith.subf %75, %89 : vector<16x128xf32>
      %91 = vector.broadcast %76 : vector<1x128xf32> to vector<16x128xf32>
      %92 = arith.mulf %90, %91 : vector<16x128xf32>
      %cst_44 = arith.constant 9.99999974E-6 : f32
      %93 = vector.broadcast %cst_44 : f32 to vector<16x1xf32>
      %94 = arith.addf %88, %93 : vector<16x1xf32>
      %95 = math.rsqrt %94 : vector<16x1xf32>
      %96 = vector.broadcast %95 : vector<16x1xf32> to vector<16x128xf32>
      %97 = arith.mulf %92, %96 : vector<16x128xf32>
      %98 = vector.broadcast %77 : vector<1x128xf32> to vector<16x128xf32>
      %99 = arith.addf %97, %98 : vector<16x128xf32>
      %c0_45 = arith.constant 0 : index
      %c0_46 = arith.constant 0 : index
      %100 = vector.load %arg7[%c0_45, %c0_46] : memref<128x256xf32, #tpu.memory_space<vmem>>, vector<128x256xf32>
      %cst_47 = arith.constant dense<0.000000e+00> : vector<16x256xf32>
      %101 = tpu.matmul %99, %100, %cst_47 {dimension_numbers = #tpu.dot_dimension_numbers<[1], [0], [0], [1], [0, 0, 1, 1], [], []>} : vector<16x128xf32>, vector<128x256xf32>, vector<16x256xf32> -> vector<16x256xf32>
      %102 = vector.extract_strided_slice %101 {offsets = [0, 0], sizes = [16, 128], strides = [1, 1]} : vector<16x256xf32> to vector<16x128xf32>
      %c0_48 = arith.constant 0 : index
      %c0_49 = arith.constant 0 : index
      %103 = vector.load %arg10[%c0_48, %c0_49] : memref<16x128xf32, #tpu.memory_space<vmem>>, vector<16x128xf32>
      tpu.vector_store %arg10[%c0_48, %c0_49], %102 {strides = array<i32>} : memref<16x128xf32, #tpu.memory_space<vmem>>, vector<16x128xf32>,
      %104 = vector.extract_strided_slice %101 {offsets = [0, 128], sizes = [16, 128], strides = [1, 1]} : vector<16x256xf32> to vector<16x128xf32>
      %c0_50 = arith.constant 0 : index
      %c0_51 = arith.constant 0 : index
      %105 = vector.load %arg11[%c0_50, %c0_51] : memref<16x128xf32, #tpu.memory_space<vmem>>, vector<16x128xf32>
      tpu.vector_store %arg11[%c0_50, %c0_51], %104 {strides = array<i32>} : memref<16x128xf32, #tpu.memory_space<vmem>>, vector<16x128xf32>,
    } else {
    }
    %c0 = arith.constant 0 : index
    %c0_1 = arith.constant 0 : index
    %c0_2 = arith.constant 0 : index
    %3 = vector.load %arg3[%c0, %c0_1, %c0_2] : memref<1x8x128xf32, #tpu.memory_space<vmem>>, vector<1x8x128xf32>
    %4 = vector.shape_cast %3 : vector<1x8x128xf32> to vector<8x128xf32>
    %c0_3 = arith.constant 0 : index
    %c0_4 = arith.constant 0 : index
    %5 = vector.load %arg4[%c0_3, %c0_4] : memref<1x128xf32, #tpu.memory_space<vmem>>, vector<1x128xf32>
    %c0_5 = arith.constant 0 : index
    %c0_6 = arith.constant 0 : index
    %6 = vector.load %arg5[%c0_5, %c0_6] : memref<1x128xf32, #tpu.memory_space<vmem>>, vector<1x128xf32>
    %cst = arith.constant dense<0.000000e+00> : vector<8xf32>
    %7 = vector.multi_reduction <add>, %4, %cst [1] : vector<8x128xf32> to vector<8xf32>
    %8 = vector.shape_cast %7 : vector<8xf32> to vector<8x1xf32>
    %cst_7 = arith.constant 1.280000e+02 : f32
    %9 = vector.broadcast %cst_7 : f32 to vector<8x1xf32>
    %10 = arith.divf %8, %9 : vector<8x1xf32>
    %11 = vector.broadcast %10 : vector<8x1xf32> to vector<8x128xf32>
    %12 = arith.subf %4, %11 : vector<8x128xf32>
    %13 = arith.mulf %12, %12 : vector<8x128xf32>
    %cst_8 = arith.constant dense<0.000000e+00> : vector<8xf32>
    %14 = vector.multi_reduction <add>, %13, %cst_8 [1] : vector<8x128xf32> to vector<8xf32>
    %15 = vector.shape_cast %14 : vector<8xf32> to vector<8x1xf32>
    %cst_9 = arith.constant 1.280000e+02 : f32
    %16 = vector.broadcast %cst_9 : f32 to vector<8x1xf32>
    %17 = arith.divf %15, %16 : vector<8x1xf32>
    %18 = vector.broadcast %10 : vector<8x1xf32> to vector<8x128xf32>
    %19 = arith.subf %4, %18 : vector<8x128xf32>
    %20 = vector.broadcast %5 : vector<1x128xf32> to vector<8x128xf32>
    %21 = arith.mulf %19, %20 : vector<8x128xf32>
    %cst_10 = arith.constant 9.99999974E-6 : f32
    %22 = vector.broadcast %cst_10 : f32 to vector<8x1xf32>
    %23 = arith.addf %17, %22 : vector<8x1xf32>
    %24 = math.rsqrt %23 : vector<8x1xf32>
    %25 = vector.broadcast %24 : vector<8x1xf32> to vector<8x128xf32>
    %26 = arith.mulf %21, %25 : vector<8x128xf32>
    %27 = vector.broadcast %6 : vector<1x128xf32> to vector<8x128xf32>
    %28 = arith.addf %26, %27 : vector<8x128xf32>
    %cst_11 = arith.constant 0.176776692 : f32
    %29 = vector.broadcast %cst_11 : f32 to vector<8x128xf32>
    %30 = arith.mulf %28, %29 : vector<8x128xf32>
    %c0_12 = arith.constant 0 : index
    %c0_13 = arith.constant 0 : index
    %31 = vector.load %arg6[%c0_12, %c0_13] : memref<128x128xf32, #tpu.memory_space<vmem>>, vector<128x128xf32>
    %cst_14 = arith.constant dense<0.000000e+00> : vector<8x128xf32>
    %32 = tpu.matmul %30, %31, %cst_14 {dimension_numbers = #tpu.dot_dimension_numbers<[1], [0], [0], [1], [0, 0, 1, 1], [], []>} : vector<8x128xf32>, vector<128x128xf32>, vector<8x128xf32> -> vector<8x128xf32>
    %33 = vector.shape_cast %32 : vector<8x128xf32> to vector<8x4x32xf32>
    %34 = tpu.transpose %33, [1, 0, 2] : vector<8x4x32xf32> -> vector<4x8x32xf32>
    %c0_15 = arith.constant 0 : index
    %c0_16 = arith.constant 0 : index
    %35 = vector.load %arg10[%c0_15, %c0_16] : memref<16x128xf32, #tpu.memory_space<vmem>>, vector<16x128xf32>
    %36 = vector.shape_cast %35 : vector<16x128xf32> to vector<16x4x32xf32>
    %37 = tpu.transpose %36, [1, 0, 2] : vector<16x4x32xf32> -> vector<4x16x32xf32>
    %c0_17 = arith.constant 0 : index
    %c0_18 = arith.constant 0 : index
    %38 = vector.load %arg11[%c0_17, %c0_18] : memref<16x128xf32, #tpu.memory_space<vmem>>, vector<16x128xf32>
    %39 = vector.shape_cast %38 : vector<16x128xf32> to vector<16x4x32xf32>
    %40 = tpu.transpose %39, [1, 0, 2] : vector<16x4x32xf32> -> vector<4x16x32xf32>
    "tpu.trace_start"() <{level = 10 : i32, message = "hqc,hkc->hqk"}> : () -> ()
    %cst_19 = arith.constant dense<0.000000e+00> : vector<4x8x16xf32>
    %41 = tpu.matmul %34, %37, %cst_19 {dimension_numbers = #tpu.dot_dimension_numbers<[2], [2], [1], [1], [0, 0, 0, 1, 1, 1], [0], [0]>} : vector<4x8x32xf32>, vector<4x16x32xf32>, vector<4x8x16xf32> -> vector<4x8x16xf32>
    "tpu.trace_stop"() : () -> ()
    %c8_i32 = arith.constant 8 : i32
    %42 = arith.muli %arg1, %c8_i32 : i32
    %43 = tpu.iota {dimensions = array<i32: 0>} : vector<8x16xi32>
    %44 = vector.broadcast %42 : i32 to vector<8x16xi32>
    %45 = arith.addi %44, %43 : vector<8x16xi32>
    %46 = tpu.iota {dimensions = array<i32: 1>} : vector<8x16xi32>
    %47 = arith.cmpi sge, %45, %46 : vector<8x16xi32>
    %48 = vector.shape_cast %47 : vector<8x16xi1> to vector<1x8x16xi1>
    %cst_20 = arith.constant -1.000000e+30 : f32
    %49 = vector.shape_cast %48 : vector<1x8x16xi1> to vector<1x8x16xi1>
    %50 = vector.broadcast %49 : vector<1x8x16xi1> to vector<4x8x16xi1>
    %51 = vector.broadcast %cst_20 : f32 to vector<4x8x16xf32>
    %52 = arith.select %50, %41, %51 : vector<4x8x16xi1>, vector<4x8x16xf32>
    %cst_21 = arith.constant dense<0xFF800000> : vector<4x8xf32>
    %53 = vector.multi_reduction <maximumf>, %52, %cst_21 [2] : vector<4x8x16xf32> to vector<4x8xf32>
    %54 = vector.shape_cast %53 : vector<4x8xf32> to vector<4x8x1xf32>
    %55 = vector.broadcast %54 : vector<4x8x1xf32> to vector<4x8x16xf32>
    %56 = arith.subf %52, %55 : vector<4x8x16xf32>
    %57 = math.exp %56 : vector<4x8x16xf32>
    %cst_22 = arith.constant dense<0.000000e+00> : vector<4x8xf32>
    %58 = vector.multi_reduction <add>, %57, %cst_22 [2] : vector<4x8x16xf32> to vector<4x8xf32>
    %59 = vector.shape_cast %58 : vector<4x8xf32> to vector<4x8x1xf32>
    %60 = tpu.reciprocal %59 {approx = true} : vector<4x8x1xf32> -> vector<4x8x1xf32>
    %61 = vector.broadcast %60 : vector<4x8x1xf32> to vector<4x8x16xf32>
    %62 = arith.mulf %57, %61 : vector<4x8x16xf32>
    "tpu.trace_start"() <{level = 10 : i32, message = "hqk,hkc->hqc"}> : () -> ()
    %cst_23 = arith.constant dense<0.000000e+00> : vector<4x8x32xf32>
    %63 = tpu.matmul %62, %40, %cst_23 {dimension_numbers = #tpu.dot_dimension_numbers<[2], [1], [1], [2], [0, 0, 0, 1, 1, 2], [0], [0]>} : vector<4x8x16xf32>, vector<4x16x32xf32>, vector<4x8x32xf32> -> vector<4x8x32xf32>
    "tpu.trace_stop"() : () -> ()
    %64 = tpu.transpose %63, [1, 0, 2] : vector<4x8x32xf32> -> vector<8x4x32xf32>
    %65 = vector.shape_cast %64 : vector<8x4x32xf32> to vector<8x128xf32>
    %c0_24 = arith.constant 0 : index
    %c0_25 = arith.constant 0 : index
    %66 = vector.load %arg8[%c0_24, %c0_25] : memref<128x128xf32, #tpu.memory_space<vmem>>, vector<128x128xf32>
    %cst_26 = arith.constant dense<0.000000e+00> : vector<8x128xf32>
    %67 = tpu.matmul %65, %66, %cst_26 {dimension_numbers = #tpu.dot_dimension_numbers<[1], [0], [0], [1], [0, 0, 1, 1], [], []>} : vector<8x128xf32>, vector<128x128xf32>, vector<8x128xf32> -> vector<8x128xf32>
    %c0_27 = arith.constant 0 : index
    %c0_28 = arith.constant 0 : index
    %c0_29 = arith.constant 0 : index
    %68 = vector.load %arg3[%c0_27, %c0_28, %c0_29] : memref<1x8x128xf32, #tpu.memory_space<vmem>>, vector<1x8x128xf32>
    %69 = vector.shape_cast %68 : vector<1x8x128xf32> to vector<8x128xf32>
    %70 = arith.addf %69, %67 : vector<8x128xf32>
    %c0_30 = arith.constant 0 : index
    %c0_31 = arith.constant 0 : index
    %c0_32 = arith.constant 0 : index
    %71 = vector.load %arg9[%c0_30, %c0_31, %c0_32] : memref<1x8x128xf32, #tpu.memory_space<vmem>>, vector<1x8x128xf32>
    %72 = vector.shape_cast %71 : vector<1x8x128xf32> to vector<8x128xf32>
    %73 = vector.shape_cast %70 : vector<8x128xf32> to vector<1x8x128xf32>
    tpu.vector_store %arg9[%c0_30, %c0_31, %c0_32], %73 {strides = array<i32>} : memref<1x8x128xf32, #tpu.memory_space<vmem>>, vector<1x8x128xf32>,
    return
  }
  func.func @transform_0(%arg0: i32, %arg1: i32) -> (i32, i32, i32) {
    %c0_i32 = arith.constant 0 : i32
    %c0_i32_0 = arith.constant 0 : i32
    %c0_i32_1 = arith.constant 0 : i32
    return %arg0, %c0_i32, %c0_i32_0 : i32, i32, i32
  }
  func.func @transform_1(%arg0: i32, %arg1: i32) -> (i32, i32, i32) {
    %c0_i32 = arith.constant 0 : i32
    %c0_i32_0 = arith.constant 0 : i32
    return %arg0, %arg1, %c0_i32 : i32, i32, i32
  }
  func.func @transform_2(%arg0: i32, %arg1: i32) -> (i32, i32) {
    %c0_i32 = arith.constant 0 : i32
    %c0_i32_0 = arith.constant 0 : i32
    %c0_i32_1 = arith.constant 0 : i32
    return %c0_i32, %c0_i32_0 : i32, i32
  }
  func.func @transform_3(%arg0: i32, %arg1: i32) -> (i32, i32) {
    %c0_i32 = arith.constant 0 : i32
    %c0_i32_0 = arith.constant 0 : i32
    %c0_i32_1 = arith.constant 0 : i32
    return %c0_i32, %c0_i32_0 : i32, i32
  }
  func.func @transform_4(%arg0: i32, %arg1: i32) -> (i32, i32) {
    %c0_i32 = arith.constant 0 : i32
    %c0_i32_0 = arith.constant 0 : i32
    %c0_i32_1 = arith.constant 0 : i32
    return %c0_i32, %c0_i32_0 : i32, i32
  }
  func.func @transform_5(%arg0: i32, %arg1: i32) -> (i32, i32) {
    %c0_i32 = arith.constant 0 : i32
    %c0_i32_0 = arith.constant 0 : i32
    %c0_i32_1 = arith.constant 0 : i32
    return %c0_i32, %c0_i32_0 : i32, i32
  }
  func.func @transform_6(%arg0: i32, %arg1: i32) -> (i32, i32) {
    %c0_i32 = arith.constant 0 : i32
    %c0_i32_0 = arith.constant 0 : i32
    %c0_i32_1 = arith.constant 0 : i32
    return %c0_i32, %c0_i32_0 : i32, i32
  }
  func.func @transform_7(%arg0: i32, %arg1: i32) -> (i32, i32, i32) {
    %c0_i32 = arith.constant 0 : i32
    %c0_i32_0 = arith.constant 0 : i32
    return %arg0, %arg1, %c0_i32 : i32, i32, i32
  }
}

</mosaic_0001>

<llo_original>
// kernel: tpu_custom_call.1
$region0: #{tpu_custom_call.1}
  #allocation0 [shape = 'u32[]', space=smem, size = 0x4, offset = 0x4, fixed_abs, tag = 'smem constant byte address 0x4 - core index']
  #allocation1 [shape = 'u32[144,128]{1,0:T(1,128)}', space=vmem, size = 0x12000, scoped, tag = 'internal scratch']
  #allocation2 [shape = 'f32[16,128]{1,0:T(8,128)}', space=vmem, size = 0x2000, scoped, tag = 'scratch operand']
  #allocation3 [shape = 'f32[16,128]{1,0:T(8,128)}', space=vmem, size = 0x2000, scoped, tag = 'scratch operand']
  %s0 = inlined_call_operand.hbm [shape: f32[2,16,128], index: 0, kind: input, shape index: {}]
  %s1 = inlined_call_operand.hbm [shape: f32[2,16,128], index: 1, kind: input, shape index: {}]
  %s2 = inlined_call_operand.vmem [shape: f32[1,128], index: 2, kind: input, shape index: {}]
  %s3 = inlined_call_operand.vmem [shape: f32[1,128], index: 3, kind: input, shape index: {}]
  %s4 = inlined_call_operand.hbm [shape: f32[128,128], index: 4, kind: input, shape index: {}]
  %s5 = inlined_call_operand.hbm [shape: f32[128,256], index: 5, kind: input, shape index: {}]
  %s6 = inlined_call_operand.hbm [shape: f32[128,128], index: 6, kind: input, shape index: {}]
  %s7 = inlined_call_operand.hbm [shape: f32[2,16,128], index: 7, kind: output, shape index: {}]
  %s8 = sld [smem:[#allocation0]]
  $region85: #{tpu_custom_call.1} parent=0
    _
  %s10 = ssub.s32 1, %s8
  %s11 = scalar_select 0, %s10, %s8
  $region1: #{tpu_custom_call.1} parent=0
    #allocation4 [shape = 'u8[16384]{0}', space=vmem, size = 0x4000, scoped, tag = 'input window, operand 0']
    #allocation5 [shape = 's32[2]{0}', space=sflag, size = 0x8, scoped, tag = 'scoped memory for tpu_custom_call.1']
    #allocation6 [shape = 's32[2]{0}', space=sflag, size = 0x8, scoped, tag = 'scoped memory for tpu_custom_call.1']
    #allocation7 [shape = 'u8[8192]{0}', space=vmem, size = 0x2000, scoped, tag = 'input window, operand 1']
    #allocation8 [shape = 's32[2]{0}', space=sflag, size = 0x8, scoped, tag = 'scoped memory for tpu_custom_call.1']
    #allocation9 [shape = 'u8[65536]{0}', space=vmem, size = 0x10000, scoped, tag = 'input window, operand 4, single buffered']
    #allocation10 [shape = 'u8[131072]{0}', space=vmem, size = 0x20000, scoped, tag = 'input window, operand 5, single buffered']
    #allocation11 [shape = 's32[1]{0}', space=sflag, size = 0x4, scoped, tag = 'scoped memory for tpu_custom_call.1']
    #allocation12 [shape = 'u8[65536]{0}', space=vmem, size = 0x10000, scoped, tag = 'input window, operand 6, single buffered']
    #allocation13 [shape = 'u8[8192]{0}', space=vmem, size = 0x2000, scoped, tag = 'output window, operand 0']
    %12 = vsyncpa [#allocation5], 0
    %s13 = scalar_lea.sflag [#allocation5], 1
    %14 = vsyncpa %s13, 0
    %15 = vsyncpa [#allocation8], 0
    %s16 = scalar_lea.sflag [#allocation8], 1
    %17 = vsyncpa %s16, 0
    %18 = vsyncpa [#allocation11], 0
    %19 = vsyncpa [#allocation6], 0
    %s20 = scalar_lea.sflag [#allocation6], 1
    %21 = vsyncpa %s20, 0
    loop: start=0, step=1, limit=6
    $region2: #{tpu_custom_call.1} parent=1 // loop_pre_header
      _
    $region3: #{tpu_custom_call.1} parent=1 // loop_header
      %s23 = sphi 0, %s27
      %p24 = scmp.ge.s32.totalorder %s23, 6
      %s30 = sphi 0, %s42
      %s31 = sphi 0, %s38
      %s32 = sphi 0, %s30
      %s33 = sphi 0, %s31
      %s34 = sphi 0, %s32
      %s35 = sphi 0, %s33
      %s45 = sphi 0, %s47
      %s48 = sphi 0, %s45
      %s49 = sphi 0, %s48
      %s65 = sphi 0, %s49
      %s73 = sphi 0, %s75
      %s76 = sphi 0, %s73
      %s77 = sphi 0, %s76
      %s93 = sphi 0, %s77
      %s97 = sphi 0, %s97
      %s99 = sphi 0, %s97
      %s100 = sphi 0, %s99
      %s114 = sphi 0, %s100
      %s118 = sphi 0, %s118
      %s120 = sphi 0, %s118
      %s121 = sphi 0, %s120
      %s135 = sphi 0, %s121
      %s139 = sphi 0, %s139
      %s141 = sphi 0, %s139
      %s142 = sphi 0, %s141
      %s156 = sphi 0, %s142
      %s160 = sphi 0, %s160
      %s162 = sphi 0, %s160
      %s163 = sphi 0, %s162
      %s177 = sphi 0, %s163
      %s181 = sphi 0, %s181
      %s183 = sphi 0, %s181
      %s184 = sphi 0, %s183
      %s198 = sphi 0, %s184
      %s206 = sphi 0, %s208
      %s209 = sphi 0, %s206
      %s210 = sphi 0, %s209
      %s226 = sphi 0, %s210
    $region4: #{tpu_custom_call.1} parent=1 // loop_header_branch
      %26 = sbr.rel (%p24) target = $region8
    $region5: #{tpu_custom_call.1} parent=1 // loop_body
      %s28 = ssub.s32 %s23, 1
      %s29 = ssub.s32 %s23, 2
      %s36 = sadd.s32 1, %s31
      %p37 = scmp.ge.s32.totalorder %s36, 2
      %s38 = scalar_select %p37, 0, %s36
      %s39 = sadd.s32 1, %s30
      %s40 = scalar_select %p37, %s39, %s30
      %p41 = scmp.ge.s32.totalorder %s40, 2
      %s42 = scalar_select %p41, 0, %s40
      %s43 = ssub.s32 %s30, %s42
      %p44 = scmp.eq.s32.totalorder %s43, 0
      %s46 = sadd.s32 %s45, 1
      %s47 = scalar_select %p44, %s45, %s46
      %p50 = pneg %p44
      %p51 = scmp.eq.s32.totalorder %s23, 3
      %p52 = por %p50, %p51
      %p53 = scmp.ne.s32.totalorder %s45, %s48
      %p54 = scmp.eq.s32.totalorder %s23, 0
      %p55 = por %p53, %p54
      %p56 = scmp.ne.s32.totalorder %s45, %s48
      %p57 = scmp.eq.s32.totalorder %s28, 3
      %p58 = por %p56, %p57
      %p59 = scmp.ne.s32.totalorder %s48, %s49
      %p60 = scmp.eq.s32.totalorder %s28, 0
      %p61 = por %p59, %p60
      %p62 = scmp.ne.s32.totalorder %s48, %s49
      %p63 = scmp.eq.s32.totalorder %s29, 3
      %p64 = por %p62, %p63
      %p66 = scmp.ne.s32.totalorder %s49, %s65
      %p67 = scmp.eq.s32.totalorder %s29, 0
      %p68 = por %p66, %p67
      %s69 = ssub.s32 %s30, %s42
      %s70 = ssub.s32 %s31, %s38
      %s71 = sor.u32 %s69, %s70
      %p72 = scmp.eq.s32.totalorder %s71, 0
      %s74 = sadd.s32 %s73, 1
      %s75 = scalar_select %p72, %s73, %s74
      %p78 = pneg %p72
      %p79 = scmp.eq.s32.totalorder %s23, 3
      %p80 = por %p78, %p79
      %p81 = scmp.ne.s32.totalorder %s73, %s76
      %p82 = scmp.eq.s32.totalorder %s23, 0
      %p83 = por %p81, %p82
      %p84 = scmp.ne.s32.totalorder %s73, %s76
      %p85 = scmp.eq.s32.totalorder %s28, 3
      %p86 = por %p84, %p85
      %p87 = scmp.ne.s32.totalorder %s76, %s77
      %p88 = scmp.eq.s32.totalorder %s28, 0
      %p89 = por %p87, %p88
      %p90 = scmp.ne.s32.totalorder %s76, %s77
      %p91 = scmp.eq.s32.totalorder %s29, 3
      %p92 = por %p90, %p91
      %p94 = scmp.ne.s32.totalorder %s77, %s93
      %p95 = scmp.eq.s32.totalorder %s29, 0
      %p96 = por %p94, %p95
      %s98 = sadd.s32 %s97, 1
      %p101 = scmp.eq.s32.totalorder %s23, 3
      %p102 = scmp.ne.s32.totalorder %s97, %s99
      %p103 = scmp.eq.s32.totalorder %s23, 0
      %p104 = por %p102, %p103
      %p105 = scmp.ne.s32.totalorder %s97, %s99
      %p106 = scmp.eq.s32.totalorder %s28, 3
      %p107 = por %p105, %p106
      %p108 = scmp.ne.s32.totalorder %s99, %s100
      %p109 = scmp.eq.s32.totalorder %s28, 0
      %p110 = por %p108, %p109
      %p111 = scmp.ne.s32.totalorder %s99, %s100
      %p112 = scmp.eq.s32.totalorder %s29, 3
      %p113 = por %p111, %p112
      %p115 = scmp.ne.s32.totalorder %s100, %s114
      %p116 = scmp.eq.s32.totalorder %s29, 0
      %p117 = por %p115, %p116
      %s119 = sadd.s32 %s118, 1
      %p122 = scmp.eq.s32.totalorder %s23, 3
      %p123 = scmp.ne.s32.totalorder %s118, %s120
      %p124 = scmp.eq.s32.totalorder %s23, 0
      %p125 = por %p123, %p124
      %p126 = scmp.ne.s32.totalorder %s118, %s120
      %p127 = scmp.eq.s32.totalorder %s28, 3
      %p128 = por %p126, %p127
      %p129 = scmp.ne.s32.totalorder %s120, %s121
      %p130 = scmp.eq.s32.totalorder %s28, 0
      %p131 = por %p129, %p130
      %p132 = scmp.ne.s32.totalorder %s120, %s121
      %p133 = scmp.eq.s32.totalorder %s29, 3
      %p134 = por %p132, %p133
      %p136 = scmp.ne.s32.totalorder %s121, %s135
      %p137 = scmp.eq.s32.totalorder %s29, 0
      %p138 = por %p136, %p137
      %s140 = sadd.s32 %s139, 1
      %p143 = scmp.eq.s32.totalorder %s23, 3
      %p144 = scmp.ne.s32.totalorder %s139, %s141
      %p145 = scmp.eq.s32.totalorder %s23, 0
      %p146 = por %p144, %p145
      %p147 = scmp.ne.s32.totalorder %s139, %s141
      %p148 = scmp.eq.s32.totalorder %s28, 3
      %p149 = por %p147, %p148
      %p150 = scmp.ne.s32.totalorder %s141, %s142
      %p151 = scmp.eq.s32.totalorder %s28, 0
      %p152 = por %p150, %p151
      %p153 = scmp.ne.s32.totalorder %s141, %s142
      %p154 = scmp.eq.s32.totalorder %s29, 3
      %p155 = por %p153, %p154
      %p157 = scmp.ne.s32.totalorder %s142, %s156
      %p158 = scmp.eq.s32.totalorder %s29, 0
      %p159 = por %p157, %p158
      %s161 = sadd.s32 %s160, 1
      %p164 = scmp.eq.s32.totalorder %s23, 3
      %p165 = scmp.ne.s32.totalorder %s160, %s162
      %p166 = scmp.eq.s32.totalorder %s23, 0
      %p167 = por %p165, %p166
      %p168 = scmp.ne.s32.totalorder %s160, %s162
      %p169 = scmp.eq.s32.totalorder %s28, 3
      %p170 = por %p168, %p169
      %p171 = scmp.ne.s32.totalorder %s162, %s163
      %p172 = scmp.eq.s32.totalorder %s28, 0
      %p173 = por %p171, %p172
      %p174 = scmp.ne.s32.totalorder %s162, %s163
      %p175 = scmp.eq.s32.totalorder %s29, 3
      %p176 = por %p174, %p175
      %p178 = scmp.ne.s32.totalorder %s163, %s177
      %p179 = scmp.eq.s32.totalorder %s29, 0
      %p180 = por %p178, %p179
      %s182 = sadd.s32 %s181, 1
      %p185 = scmp.eq.s32.totalorder %s23, 3
      %p186 = scmp.ne.s32.totalorder %s181, %s183
      %p187 = scmp.eq.s32.totalorder %s23, 0
      %p188 = por %p186, %p187
      %p189 = scmp.ne.s32.totalorder %s181, %s183
      %p190 = scmp.eq.s32.totalorder %s28, 3
      %p191 = por %p189, %p190
      %p192 = scmp.ne.s32.totalorder %s183, %s184
      %p193 = scmp.eq.s32.totalorder %s28, 0
      %p194 = por %p192, %p193
      %p195 = scmp.ne.s32.totalorder %s183, %s184
      %p196 = scmp.eq.s32.totalorder %s29, 3
      %p197 = por %p195, %p196
      %p199 = scmp.ne.s32.totalorder %s184, %s198
      %p200 = scmp.eq.s32.totalorder %s29, 0
      %p201 = por %p199, %p200
      %s202 = ssub.s32 %s30, %s42
      %s203 = ssub.s32 %s31, %s38
      %s204 = sor.u32 %s202, %s203
      %p205 = scmp.eq.s32.totalorder %s204, 0
      %s207 = sadd.s32 %s206, 1
      %s208 = scalar_select %p205, %s206, %s207
      %p211 = pneg %p205
      %p212 = scmp.eq.s32.totalorder %s23, 3
      %p213 = por %p211, %p212
      %p214 = scmp.ne.s32.totalorder %s206, %s209
      %p215 = scmp.eq.s32.totalorder %s23, 0
      %p216 = por %p214, %p215
      %p217 = scmp.ne.s32.totalorder %s206, %s209
      %p218 = scmp.eq.s32.totalorder %s28, 3
      %p219 = por %p217, %p218
      %p220 = scmp.ne.s32.totalorder %s209, %s210
      %p221 = scmp.eq.s32.totalorder %s28, 0
      %p222 = por %p220, %p221
      %p223 = scmp.ne.s32.totalorder %s209, %s210
      %p224 = scmp.eq.s32.totalorder %s29, 3
      %p225 = por %p223, %p224
      %p227 = scmp.ne.s32.totalorder %s210, %s226
      %p228 = scmp.eq.s32.totalorder %s29, 0
      %p229 = por %p227, %p228
      %p230 = scmp.le.s32.totalorder 1, %s23
      %p231 = scmp.lt.s32.totalorder %s23, 5
      %p232 = pnand %p230, %p231
      %p233 = pneg %p232
      // Predicated region
      $region9: #{tpu_custom_call.1} parent=5 // pred_check
        _
      $region10: #{tpu_custom_call.1} parent=5 // pred_check_branch
        %235 = sbr.rel (%p232) target = $region12
      $region11: #{tpu_custom_call.1} parent=5 // pred_region
        %s236 = ssub.s32 %s23, 1
        // Predicated region
        $region13: #{tpu_custom_call.1} parent=11 // pred_check
          %p237 = pneg %p110
        $region14: #{tpu_custom_call.1} parent=11 // pred_check_branch
          %239 = sbr.rel (%p237) target = $region16
        $region15: #{tpu_custom_call.1} parent=11 // pred_region
          _
        $region16: #{tpu_custom_call.1} parent=11 // pred_fallthru
          _
        // Predicated region
        $region17: #{tpu_custom_call.1} parent=11 // pred_check
          %p240 = pneg %p131
        $region18: #{tpu_custom_call.1} parent=11 // pred_check_branch
          %242 = sbr.rel (%p240) target = $region20
        $region19: #{tpu_custom_call.1} parent=11 // pred_region
          _
        $region20: #{tpu_custom_call.1} parent=11 // pred_fallthru
          _
        // Predicated region
        $region21: #{tpu_custom_call.1} parent=11 // pred_check
          %p243 = pneg %p152
        $region22: #{tpu_custom_call.1} parent=11 // pred_check_branch
          %245 = sbr.rel (%p243) target = $region24
        $region23: #{tpu_custom_call.1} parent=11 // pred_region
          %s247 = ssub.s32 2048, 2048
          %248 = vsyncadd [#allocation8], %s247
          %s249 = sshll.u32 [#allocation9], 4
          %s250 = int_to_ptr.vmem [resolvable:$true] %s249
          %255 = dma.hbm_to_vmem [thread:$0]  %s4, 2048, %s250, [#allocation8], 128, 128, 8
        $region24: #{tpu_custom_call.1} parent=11 // pred_fallthru
          _
        // Predicated region
        $region25: #{tpu_custom_call.1} parent=11 // pred_check
          %p256 = pneg %p173
        $region26: #{tpu_custom_call.1} parent=11 // pred_check_branch
          %258 = sbr.rel (%p256) target = $region28
        $region27: #{tpu_custom_call.1} parent=11 // pred_region
          %s260 = ssub.s32 4096, 4096
          %261 = vsyncadd [#allocation11], %s260
          %s262 = sshll.u32 [#allocation10], 4
          %s263 = int_to_ptr.vmem [resolvable:$true] %s262
          %268 = dma.hbm_to_vmem [thread:$0]  %s5, 4096, %s263, [#allocation11], 256, 256, 16
        $region28: #{tpu_custom_call.1} parent=11 // pred_fallthru
          _
        // Predicated region
        $region29: #{tpu_custom_call.1} parent=11 // pred_check
          %p269 = pneg %p194
        $region30: #{tpu_custom_call.1} parent=11 // pred_check_branch
          %271 = sbr.rel (%p269) target = $region32
        $region31: #{tpu_custom_call.1} parent=11 // pred_region
          %s273 = ssub.s32 2048, 2048
          %274 = vsyncadd [#allocation11], %s273
          %s275 = sshll.u32 [#allocation12], 4
          %s276 = int_to_ptr.vmem [resolvable:$true] %s275
          %281 = dma.hbm_to_vmem [thread:$0]  %s6, 2048, %s276, [#allocation11], 128, 128, 8
        $region32: #{tpu_custom_call.1} parent=11 // pred_fallthru
          _
      $region12: #{tpu_custom_call.1} parent=5 // pred_fallthru
        _
      %p282 = scmp.lt.s32.totalorder %s23, 4
      // Predicated region
      $region33: #{tpu_custom_call.1} parent=5 // pred_check
        %p283 = pneg %p282
      $region34: #{tpu_custom_call.1} parent=5 // pred_check_branch
        %285 = sbr.rel (%p283) target = $region36
      $region35: #{tpu_custom_call.1} parent=5 // pred_region
        // Predicated region
        $region37: #{tpu_custom_call.1} parent=35 // pred_check
          %p286 = pneg %p55
        $region38: #{tpu_custom_call.1} parent=35 // pred_check_branch
          %288 = sbr.rel (%p286) target = $region40
        $region39: #{tpu_custom_call.1} parent=35 // pred_region
          %s289 = sand.u32 %s45, 1
          %s290 = scalar_lea.sflag [#allocation5], %s289
          %s291 = sand.u32 %s45, 1
          %s292 = smul.addr %s291, 16
          %s293 = scalar_lea.vmem [#allocation4], %s292
          %s295 = ssub.s32 256, 256
          %296 = vsyncadd %s290, %s295
          %s297 = smul.addr %s30, 2
          %s298 = smul.addr %s297, 128
          %s299 = scalar_lea.hbm %s0, %s298
          %s300 = sshll.u32 %s293, 4
          %s301 = int_to_ptr.vmem [resolvable:$true] %s300
          %306 = dma.hbm_to_vmem [thread:$0]  %s299, 256, %s301, %s290, 128, 128, 8
        $region40: #{tpu_custom_call.1} parent=35 // pred_fallthru
          _
        // Predicated region
        $region41: #{tpu_custom_call.1} parent=35 // pred_check
          %p307 = pneg %p83
        $region42: #{tpu_custom_call.1} parent=35 // pred_check_branch
          %309 = sbr.rel (%p307) target = $region44
        $region43: #{tpu_custom_call.1} parent=35 // pred_region
          %s310 = sand.u32 %s23, 1
          %s311 = scalar_lea.sflag [#allocation8], %s310
          %s312 = sand.u32 %s73, 1
          %s313 = smul.addr %s312, 8
          %s314 = scalar_lea.vmem [#allocation7], %s313
          %s316 = ssub.s32 128, 128
          %317 = vsyncadd %s311, %s316
          %s318 = smul.addr %s30, 2
          %s319 = sadd.s32 %s31, %s318
          %s320 = smul.addr %s319, 128
          %s321 = scalar_lea.hbm %s1, %s320
          %s323 = sshll.u32 %s314, 4
          %s324 = int_to_ptr.vmem [resolvable:$true] %s323
          %326 = dma.hbm_to_vmem [thread:$0]  %s321, 128, %s324, %s311
        $region44: #{tpu_custom_call.1} parent=35 // pred_fallthru
          _
      $region36: #{tpu_custom_call.1} parent=5 // pred_fallthru
        _
      %p327 = scmp.le.s32.totalorder 1, %s23
      %p328 = scmp.lt.s32.totalorder %s23, 5
      %p329 = pnand %p327, %p328
      %p330 = pneg %p329
      // Predicated region
      $region45: #{tpu_custom_call.1} parent=5 // pred_check
        _
      $region46: #{tpu_custom_call.1} parent=5 // pred_check_branch
        %332 = sbr.rel (%p329) target = $region48
      $region47: #{tpu_custom_call.1} parent=5 // pred_region
        %s333 = ssub.s32 %s23, 1
        %s334 = sand.u32 %s48, 1
        %s335 = scalar_lea.sflag [#allocation5], %s334
        %s336 = sand.u32 %s48, 1
        %s337 = smul.addr %s336, 16
        %s338 = scalar_lea.vmem [#allocation4], %s337
        // Predicated region
        $region49: #{tpu_custom_call.1} parent=47 // pred_check
          %p339 = pneg %p61
        $region50: #{tpu_custom_call.1} parent=47 // pred_check_branch
          %341 = sbr.rel (%p339) target = $region52
        $region51: #{tpu_custom_call.1} parent=47 // pred_region
          %342 = dma.done %s335, 256
        $region52: #{tpu_custom_call.1} parent=47 // pred_fallthru
          _
        %s343 = sand.u32 %s28, 1
        %s344 = scalar_lea.sflag [#allocation8], %s343
        %s345 = sand.u32 %s76, 1
        %s346 = smul.addr %s345, 8
        %s347 = scalar_lea.vmem [#allocation7], %s346
        // Predicated region
        $region53: #{tpu_custom_call.1} parent=47 // pred_check
          %p348 = pneg %p89
        $region54: #{tpu_custom_call.1} parent=47 // pred_check_branch
          %350 = sbr.rel (%p348) target = $region56
        $region55: #{tpu_custom_call.1} parent=47 // pred_region
          %351 = dma.done %s344, 128
        $region56: #{tpu_custom_call.1} parent=47 // pred_fallthru
          _
        // Predicated region
        $region57: #{tpu_custom_call.1} parent=47 // pred_check
          %p352 = pneg %p152
        $region58: #{tpu_custom_call.1} parent=47 // pred_check_branch
          %354 = sbr.rel (%p352) target = $region60
        $region59: #{tpu_custom_call.1} parent=47 // pred_region
          %355 = dma.done [#allocation8], 2048
        $region60: #{tpu_custom_call.1} parent=47 // pred_fallthru
          _
        // Predicated region
        $region61: #{tpu_custom_call.1} parent=47 // pred_check
          %p356 = pneg %p173
        $region62: #{tpu_custom_call.1} parent=47 // pred_check_branch
          %358 = sbr.rel (%p356) target = $region64
        $region63: #{tpu_custom_call.1} parent=47 // pred_region
          %359 = dma.done [#allocation11], 4096
        $region64: #{tpu_custom_call.1} parent=47 // pred_fallthru
          _
        // Predicated region
        $region65: #{tpu_custom_call.1} parent=47 // pred_check
          %p360 = pneg %p194
        $region66: #{tpu_custom_call.1} parent=47 // pred_check_branch
          %362 = sbr.rel (%p360) target = $region68
        $region67: #{tpu_custom_call.1} parent=47 // pred_region
          %363 = dma.done [#allocation11], 2048
        $region68: #{tpu_custom_call.1} parent=47 // pred_fallthru
          _
        %s364 = sand.u32 %s48, 1
        %s365 = scalar_lea.sflag [#allocation5], %s364
        %s366 = sand.u32 %s48, 1
        %s367 = smul.addr %s366, 16
        %s368 = scalar_lea.vmem [#allocation4], %s367
        %p369 = pneg %p61
        %p370 = pneg %p58
        %s371 = sand.u32 %s28, 1
        %s372 = scalar_lea.sflag [#allocation8], %s371
        %s373 = sand.u32 %s76, 1
        %s374 = smul.addr %s373, 8
        %s375 = scalar_lea.vmem [#allocation7], %s374
        %p376 = pneg %p89
        %p377 = pneg %p86
        %p378 = pneg %p110
        %p379 = pneg %p107
        %p380 = pneg %p131
        %p381 = pneg %p128
        %p382 = pneg %p152
        %p383 = pneg %p149
        %p384 = pneg %p173
        %p385 = pneg %p170
        %p386 = pneg %p194
        %p387 = pneg %p191
        %p388 = pneg %p222
        %p389 = pneg %p219
        %s390 = sand.u32 %s209, 1
        %s391 = scalar_lea.sflag [#allocation6], %s390
        %s392 = sand.u32 %s209, 1
        %s393 = smul.addr %s392, 8
        %s394 = scalar_lea.vmem [#allocation13], %s393
        %p395 = scmp.eq.s32.totalorder %s33, 0
        // Predicated region
        $region69: #{tpu_custom_call.1} parent=47 // pred_check
          %p396 = pneg %p395
        $region70: #{tpu_custom_call.1} parent=47 // pred_check_branch
          %398 = sbr.rel (%p396) target = $region72
        $region71: #{tpu_custom_call.1} parent=47 // pred_region
          %v399 = vld [vmem:[%s338] sm:$0xff]
          %v400 = vld [vmem:[%s338 + $0x8] sm:$0xff]
          %v401 = vld [vmem:[%s2] sm:$0x1]
          %v402 = vld [vmem:[%s3] sm:$0x1]
          %403 = vadd.xlane.f32.xlu0 %v399
          %v404 = vpop.xlane.xlu0 %403
          %405 = vadd.xlane.f32.xlu0 %v400
          %v406 = vpop.xlane.xlu0 %405
          %v407 = vrcp.pop 128.0
          %v408 = vmul.f32 %v404, %v407
          %v409 = vmul.f32 %v406, %v407
          %v410 = vsub.f32 %v399, %v408
          %v411 = vsub.f32 %v400, %v409
          %v412 = vmul.f32 %v410, %v410
          %v413 = vmul.f32 %v411, %v411
          %414 = vadd.xlane.f32.xlu0 %v412
          %v415 = vpop.xlane.xlu0 %414
          %416 = vadd.xlane.f32.xlu0 %v413
          %v417 = vpop.xlane.xlu0 %416
          %v418 = vmul.f32 %v415, %v407
          %v419 = vmul.f32 %v417, %v407
          %v421 = vlaneseq
          %v422 = vshrl.u32 %v421, 7
          %v423 = vsub.s32 0, %v422
          %v424 = vrot.slane %v401, %v423
          %v426 = vmul.f32 %v410, %v424
          %v427 = vmul.f32 %v411, %v424
          %v428 = vadd.f32 %v418, 1e-05
          %v429 = vadd.f32 %v419, 1e-05
          %v430 = vrsqrt.pop %v428
          %v431 = vrsqrt.pop %v429
          %v432 = vmul.f32 %v426, %v430
          %v433 = vmul.f32 %v427, %v431
          %v435 = vlaneseq
          %v436 = vshrl.u32 %v435, 7
          %v437 = vsub.s32 0, %v436
          %v438 = vrot.slane %v402, %v437
          %v440 = vadd.f32 %v432, %v438
          %v441 = vadd.f32 %v433, %v438
          %v442 = vld [vmem:[#allocation10] sm:$0xff]
          %v443 = vld [vmem:[#allocation10 + $0x8] sm:$0xff]
          %v444 = vld [vmem:[#allocation10 + $0x10] sm:$0xff]
          %v445 = vld [vmem:[#allocation10 + $0x18] sm:$0xff]
          %v446 = vld [vmem:[#allocation10 + $0x20] sm:$0xff]
          %v447 = vld [vmem:[#allocation10 + $0x28] sm:$0xff]
          %v448 = vld [vmem:[#allocation10 + $0x30] sm:$0xff]
          %v449 = vld [vmem:[#allocation10 + $0x38] sm:$0xff]
          %v450 = vld [vmem:[#allocation10 + $0x40] sm:$0xff]
          %v451 = vld [vmem:[#allocation10 + $0x48] sm:$0xff]
          %v452 = vld [vmem:[#allocation10 + $0x50] sm:$0xff]
          %v453 = vld [vmem:[#allocation10 + $0x58] sm:$0xff]
          %v454 = vld [vmem:[#allocation10 + $0x60] sm:$0xff]
          %v455 = vld [vmem:[#allocation10 + $0x68] sm:$0xff]
          %v456 = vld [vmem:[#allocation10 + $0x70] sm:$0xff]
          %v457 = vld [vmem:[#allocation10 + $0x78] sm:$0xff]
          %v458 = vld [vmem:[#allocation10 + $0x80] sm:$0xff]
          %v459 = vld [vmem:[#allocation10 + $0x88] sm:$0xff]
          %v460 = vld [vmem:[#allocation10 + $0x90] sm:$0xff]
          %v461 = vld [vmem:[#allocation10 + $0x98] sm:$0xff]
          %v462 = vld [vmem:[#allocation10 + $0xa0] sm:$0xff]
          %v463 = vld [vmem:[#allocation10 + $0xa8] sm:$0xff]
          %v464 = vld [vmem:[#allocation10 + $0xb0] sm:$0xff]
          %v465 = vld [vmem:[#allocation10 + $0xb8] sm:$0xff]
          %v466 = vld [vmem:[#allocation10 + $0xc0] sm:$0xff]
          %v467 = vld [vmem:[#allocation10 + $0xc8] sm:$0xff]
          %v468 = vld [vmem:[#allocation10 + $0xd0] sm:$0xff]
          %v469 = vld [vmem:[#allocation10 + $0xd8] sm:$0xff]
          %v470 = vld [vmem:[#allocation10 + $0xe0] sm:$0xff]
          %v471 = vld [vmem:[#allocation10 + $0xe8] sm:$0xff]
          %v472 = vld [vmem:[#allocation10 + $0xf0] sm:$0xff]
          %v473 = vld [vmem:[#allocation10 + $0xf8] sm:$0xff]
          %474 = vmatprep.subr.mxu0 %v443
          %475 = vmatpush1.msra.mxu0 %v442
          %476 = vmatprep.subr.mxu0 %v445
          %477 = vmatpush1.msra.mxu0 %v444
          %478 = vmatprep.subr.mxu0 %v447
          %479 = vmatpush1.msra.mxu0 %v446
          %480 = vmatprep.subr.mxu0 %v449
          %481 = vmatpush1.msra.mxu0 %v448
          %482 = vmatprep.subr.mxu0 %v451
          %483 = vmatpush1.msra.mxu0 %v450
          %484 = vmatprep.subr.mxu0 %v453
          %485 = vmatpush1.msra.mxu0 %v452
          %486 = vmatprep.subr.mxu0 %v455
          %487 = vmatpush1.msra.mxu0 %v454
          %488 = vmatprep.subr.mxu0 %v457
          %489 = vmatpush1.msra.mxu0 %v456
          %490 = vmatprep.subr.mxu0 %v459
          %491 = vmatpush1.msra.mxu0 %v458
          %492 = vmatprep.subr.mxu0 %v461
          %493 = vmatpush1.msra.mxu0 %v460
          %494 = vmatprep.subr.mxu0 %v463
          %495 = vmatpush1.msra.mxu0 %v462
          %496 = vmatprep.subr.mxu0 %v465
          %497 = vmatpush1.msra.mxu0 %v464
          %498 = vmatprep.subr.mxu0 %v467
          %499 = vmatpush1.msra.mxu0 %v466
          %500 = vmatprep.subr.mxu0 %v469
          %501 = vmatpush1.msra.mxu0 %v468
          %502 = vmatprep.subr.mxu0 %v471
          %503 = vmatpush1.msra.mxu0 %v470
          %504 = vmatprep.subr.mxu0 %v473
          %505 = vmatpush1.msra.mxu0 %v472
          %506 = vmatprep.subr.mxu0 0.0
          %507 = vmatpush1.msra.mxu0 0.0
          %508 = vmatprep.subr.mxu0 0.0
          %509 = vmatpush1.msra.mxu0 0.0
          %510 = vmatprep.subr.mxu0 0.0
          %511 = vmatpush1.msra.mxu0 0.0
          %512 = vmatprep.subr.mxu0 0.0
          %513 = vmatpush1.msra.mxu0 0.0
          %514 = vmatprep.subr.mxu0 0.0
          %515 = vmatpush1.msra.mxu0 0.0
          %516 = vmatprep.subr.mxu0 0.0
          %517 = vmatpush1.msra.mxu0 0.0
          %518 = vmatprep.subr.mxu0 0.0
          %519 = vmatpush1.msra.mxu0 0.0
          %520 = vmatprep.subr.mxu0 0.0
          %521 = vmatpush1.msra.mxu0 0.0
          %522 = vmatprep.subr.mxu0 0.0
          %523 = vmatpush1.msra.mxu0 0.0
          %524 = vmatprep.subr.mxu0 0.0
          %525 = vmatpush1.msra.mxu0 0.0
          %526 = vmatprep.subr.mxu0 0.0
          %527 = vmatpush1.msra.mxu0 0.0
          %528 = vmatprep.subr.mxu0 0.0
          %529 = vmatpush1.msra.mxu0 0.0
          %530 = vmatprep.subr.mxu0 0.0
          %531 = vmatpush1.msra.mxu0 0.0
          %532 = vmatprep.subr.mxu0 0.0
          %533 = vmatpush1.msra.mxu0 0.0
          %534 = vmatprep.subr.mxu0 0.0
          %535 = vmatpush1.msra.mxu0 0.0
          %536 = vmatprep.subr.mxu0 0.0
          %537 = vmatpush1.msra.mxu0 0.0
          %538 = vmatprep.mubr.f32.mxu0 0.0
          %539 = vmatmul.mubr.f32.gmra.mrb[0].mxu0 %v440
          %v540 = vpop.f32.mrb[0].mxu0
          %v541 = vadd.f32 0.0, %v540
          %v542 = vpop.f32.mrb[0].mxu0
          %v543 = vadd.f32 0.0, %v542
          %544 = vmatprep.mubr.f32.mxu0 0.0
          %545 = vmatmul.mubr.f32.gmra.mrb[0].mxu0 %v441
          %v546 = vpop.f32.mrb[0].mxu0
          %v547 = vadd.f32 0.0, %v546
          %v548 = vpop.f32.mrb[0].mxu0
          %v549 = vadd.f32 0.0, %v548
          %550 = vdwg.mxu0
          %551 = vst [vmem:[#allocation2] sm:$0xff] %v541
          %552 = vst [vmem:[#allocation2 + $0x8] sm:$0xff] %v547
          %553 = vst [vmem:[#allocation3] sm:$0xff] %v543
          %554 = vst [vmem:[#allocation3 + $0x8] sm:$0xff] %v549
        $region72: #{tpu_custom_call.1} parent=47 // pred_fallthru
          _
        %v555 = vld [vmem:[%s347] sm:$0xff]
        %v556 = vld [vmem:[%s2] sm:$0x1]
        %v557 = vld [vmem:[%s3] sm:$0x1]
        %558 = vadd.xlane.f32.xlu0 %v555
        %v559 = vpop.xlane.xlu0 %558
        %v560 = vrcp.pop 128.0
        %v561 = vmul.f32 %v559, %v560
        %v562 = vsub.f32 %v555, %v561
        %v563 = vmul.f32 %v562, %v562
        %564 = vadd.xlane.f32.xlu0 %v563
        %v565 = vpop.xlane.xlu0 %564
        %v566 = vmul.f32 %v565, %v560
        %v568 = vlaneseq
        %v569 = vshrl.u32 %v568, 7
        %v570 = vsub.s32 0, %v569
        %v571 = vrot.slane %v556, %v570
        %v573 = vmul.f32 %v562, %v571
        %v574 = vadd.f32 %v566, 1e-05
        %v575 = vrsqrt.pop %v574
        %v576 = vmul.f32 %v573, %v575
        %v578 = vlaneseq
        %v579 = vshrl.u32 %v578, 7
        %v580 = vsub.s32 0, %v579
        %v581 = vrot.slane %v557, %v580
        %v583 = vadd.f32 %v576, %v581
        %v584 = vmul.f32 %v583, 0.17677669
        %v585 = vld [vmem:[#allocation9] sm:$0xff]
        %v586 = vld [vmem:[#allocation9 + $0x8] sm:$0xff]
        %v587 = vld [vmem:[#allocation9 + $0x10] sm:$0xff]
        %v588 = vld [vmem:[#allocation9 + $0x18] sm:$0xff]
        %v589 = vld [vmem:[#allocation9 + $0x20] sm:$0xff]
        %v590 = vld [vmem:[#allocation9 + $0x28] sm:$0xff]
        %v591 = vld [vmem:[#allocation9 + $0x30] sm:$0xff]
        %v592 = vld [vmem:[#allocation9 + $0x38] sm:$0xff]
        %v593 = vld [vmem:[#allocation9 + $0x40] sm:$0xff]
        %v594 = vld [vmem:[#allocation9 + $0x48] sm:$0xff]
        %v595 = vld [vmem:[#allocation9 + $0x50] sm:$0xff]
        %v596 = vld [vmem:[#allocation9 + $0x58] sm:$0xff]
        %v597 = vld [vmem:[#allocation9 + $0x60] sm:$0xff]
        %v598 = vld [vmem:[#allocation9 + $0x68] sm:$0xff]
        %v599 = vld [vmem:[#allocation9 + $0x70] sm:$0xff]
        %v600 = vld [vmem:[#allocation9 + $0x78] sm:$0xff]
        %601 = vmatprep.subr.mxu0 0.0
        %602 = vmatpush1.msra.mxu0 %v585
        %603 = vmatprep.subr.mxu0 0.0
        %604 = vmatpush1.msra.mxu0 %v586
        %605 = vmatprep.subr.mxu0 0.0
        %606 = vmatpush1.msra.mxu0 %v587
        %607 = vmatprep.subr.mxu0 0.0
        %608 = vmatpush1.msra.mxu0 %v588
        %609 = vmatprep.subr.mxu0 0.0
        %610 = vmatpush1.msra.mxu0 %v589
        %611 = vmatprep.subr.mxu0 0.0
        %612 = vmatpush1.msra.mxu0 %v590
        %613 = vmatprep.subr.mxu0 0.0
        %614 = vmatpush1.msra.mxu0 %v591
        %615 = vmatprep.subr.mxu0 0.0
        %616 = vmatpush1.msra.mxu0 %v592
        %617 = vmatprep.subr.mxu0 0.0
        %618 = vmatpush1.msra.mxu0 %v593
        %619 = vmatprep.subr.mxu0 0.0
        %620 = vmatpush1.msra.mxu0 %v594
        %621 = vmatprep.subr.mxu0 0.0
        %622 = vmatpush1.msra.mxu0 %v595
        %623 = vmatprep.subr.mxu0 0.0
        %624 = vmatpush1.msra.mxu0 %v596
        %625 = vmatprep.subr.mxu0 0.0
        %626 = vmatpush1.msra.mxu0 %v597
        %627 = vmatprep.subr.mxu0 0.0
        %628 = vmatpush1.msra.mxu0 %v598
        %629 = vmatprep.subr.mxu0 0.0
        %630 = vmatpush1.msra.mxu0 %v599
        %631 = vmatprep.subr.mxu0 0.0
        %632 = vmatpush1.msra.mxu0 %v600
        %633 = vmatprep.subr.mxu0 0.0
        %634 = vmatpush1.msra.mxu0 0.0
        %635 = vmatprep.subr.mxu0 0.0
        %636 = vmatpush1.msra.mxu0 0.0
        %637 = vmatprep.subr.mxu0 0.0
        %638 = vmatpush1.msra.mxu0 0.0
        %639 = vmatprep.subr.mxu0 0.0
        %640 = vmatpush1.msra.mxu0 0.0
        %641 = vmatprep.subr.mxu0 0.0
        %642 = vmatpush1.msra.mxu0 0.0
        %643 = vmatprep.subr.mxu0 0.0
        %644 = vmatpush1.msra.mxu0 0.0
        %645 = vmatprep.subr.mxu0 0.0
        %646 = vmatpush1.msra.mxu0 0.0
        %647 = vmatprep.subr.mxu0 0.0
        %648 = vmatpush1.msra.mxu0 0.0
        %649 = vmatprep.subr.mxu0 0.0
        %650 = vmatpush1.msra.mxu0 0.0
        %651 = vmatprep.subr.mxu0 0.0
        %652 = vmatpush1.msra.mxu0 0.0
        %653 = vmatprep.subr.mxu0 0.0
        %654 = vmatpush1.msra.mxu0 0.0
        %655 = vmatprep.subr.mxu0 0.0
        %656 = vmatpush1.msra.mxu0 0.0
        %657 = vmatprep.subr.mxu0 0.0
        %658 = vmatpush1.msra.mxu0 0.0
        %659 = vmatprep.subr.mxu0 0.0
        %660 = vmatpush1.msra.mxu0 0.0
        %661 = vmatprep.subr.mxu0 0.0
        %662 = vmatpush1.msra.mxu0 0.0
        %663 = vmatprep.subr.mxu0 0.0
        %664 = vmatpush1.msra.mxu0 0.0
        %665 = vmatprep.mubr.f32.mxu0 0.0
        %666 = vmatmul.mubr.f32.gmra.mrb[0].mxu0 %v584
        %v667 = vpop.f32.mrb[0].mxu0
        %v668 = vadd.f32 0.0, %v667
        %v669 = vpop.f32.mrb[0].mxu0
        %670 = vdwg.mxu0
        %672 = vrot.lane.b32.xlu0 %v668, 96
        %v673 = vpop.permute.xlu0 %672
        %675 = vrot.lane.b32.xlu0 %v668, 64
        %v676 = vpop.permute.xlu0 %675
        %678 = vrot.lane.b32.xlu0 %v668, 32
        %v679 = vpop.permute.xlu0 %678
        %v681 = vcombine.low %v668, %v676
        %v682 = vcombine.high %v668, %v676
        %v684 = vunpack.c.l.s4 1983009808
        %v685 = vunpack.c.0.s8 %v684
        %v686 = vlaneseq
        %v687 = vshrl.u32 %v686, 7
        %v688 = vsub.s32 %v685, %v687
        %v689 = vrot.slane %v681, %v688
        %v691 = vunpack.c.l.s4 1983009808
        %v692 = vunpack.c.0.s8 %v691
        %v693 = vlaneseq
        %v694 = vshrl.u32 %v693, 7
        %v695 = vsub.s32 %v692, %v694
        %v696 = vrot.slane %v682, %v695
        %v697 = vcombine.low %v673, %v679
        %v698 = vcombine.high %v673, %v679
        %v700 = vunpack.c.l.s4 1983009808
        %v701 = vunpack.c.0.s8 %v700
        %v702 = vlaneseq
        %v703 = vshrl.u32 %v702, 7
        %v704 = vsub.s32 %v701, %v703
        %v705 = vrot.slane %v697, %v704
        %v707 = vunpack.c.l.s4 1983009808
        %v708 = vunpack.c.0.s8 %v707
        %v709 = vlaneseq
        %v710 = vshrl.u32 %v709, 7
        %v711 = vsub.s32 %v708, %v710
        %v712 = vrot.slane %v698, %v711
        %v713 = vcombine.low %v689, %v705
        %v714 = vcombine.high %v689, %v705
        %v716 = vunpack.c.l.s4 1934713408
        %v717 = vunpack.c.0.s8 %v716
        %v718 = vlaneseq
        %v719 = vshrl.u32 %v718, 7
        %v720 = vsub.s32 %v717, %v719
        %v721 = vrot.slane %v713, %v720
        %v723 = vunpack.c.l.s4 1934713408
        %v724 = vunpack.c.0.s8 %v723
        %v725 = vlaneseq
        %v726 = vshrl.u32 %v725, 7
        %v727 = vsub.s32 %v724, %v726
        %v728 = vrot.slane %v714, %v727
        %v729 = vcombine.low %v696, %v712
        %v730 = vcombine.high %v696, %v712
        %v732 = vunpack.c.l.s4 1934713408
        %v733 = vunpack.c.0.s8 %v732
        %v734 = vlaneseq
        %v735 = vshrl.u32 %v734, 7
        %v736 = vsub.s32 %v733, %v735
        %v737 = vrot.slane %v729, %v736
        %v739 = vunpack.c.l.s4 1934713408
        %v740 = vunpack.c.0.s8 %v739
        %v741 = vlaneseq
        %v742 = vshrl.u32 %v741, 7
        %v743 = vsub.s32 %v740, %v742
        %v744 = vrot.slane %v730, %v743
        %v745 = vcombine.high %v721, 0.0
        %v746 = vcombine.high %v728, 0.0
        %v747 = vcombine.high %v737, 0.0
        %v748 = vcombine.high %v744, 0.0
        %v749 = vcombine.low %v721, %v728
        %v751 = vunpack.c.l.s4 1983009808
        %v752 = vunpack.c.0.s8 %v751
        %v753 = vlaneseq
        %v754 = vshrl.u32 %v753, 7
        %v755 = vsub.s32 %v752, %v754
        %v756 = vrot.slane %v749, %v755
        %v757 = vcombine.low %v745, %v746
        %v759 = vunpack.c.l.s4 1983009808
        %v760 = vunpack.c.0.s8 %v759
        %v761 = vlaneseq
        %v762 = vshrl.u32 %v761, 7
        %v763 = vsub.s32 %v760, %v762
        %v764 = vrot.slane %v757, %v763
        %v765 = vcombine.low %v737, %v744
        %v767 = vunpack.c.l.s4 1983009808
        %v768 = vunpack.c.0.s8 %v767
        %v769 = vlaneseq
        %v770 = vshrl.u32 %v769, 7
        %v771 = vsub.s32 %v768, %v770
        %v772 = vrot.slane %v765, %v771
        %v773 = vcombine.low %v747, %v748
        %v775 = vunpack.c.l.s4 1983009808
        %v776 = vunpack.c.0.s8 %v775
        %v777 = vlaneseq
        %v778 = vshrl.u32 %v777, 7
        %v779 = vsub.s32 %v776, %v778
        %v780 = vrot.slane %v773, %v779
        %v781 = vcombine.low %v756, %v764
        %v782 = vcombine.high %v756, %v764
        %v784 = vunpack.c.l.s4 1934713408
        %v785 = vunpack.c.0.s8 %v784
        %v786 = vlaneseq
        %v787 = vshrl.u32 %v786, 7
        %v788 = vsub.s32 %v785, %v787
        %v789 = vrot.slane %v781, %v788
        %v791 = vunpack.c.l.s4 1934713408
        %v792 = vunpack.c.0.s8 %v791
        %v793 = vlaneseq
        %v794 = vshrl.u32 %v793, 7
        %v795 = vsub.s32 %v792, %v794
        %v796 = vrot.slane %v782, %v795
        %v797 = vcombine.low %v772, %v780
        %v798 = vcombine.high %v772, %v780
        %v800 = vunpack.c.l.s4 1934713408
        %v801 = vunpack.c.0.s8 %v800
        %v802 = vlaneseq
        %v803 = vshrl.u32 %v802, 7
        %v804 = vsub.s32 %v801, %v803
        %v805 = vrot.slane %v797, %v804
        %v807 = vunpack.c.l.s4 1934713408
        %v808 = vunpack.c.0.s8 %v807
        %v809 = vlaneseq
        %v810 = vshrl.u32 %v809, 7
        %v811 = vsub.s32 %v808, %v810
        %v812 = vrot.slane %v798, %v811
        %v813 = vcombine.low %v789, %v805
        %v814 = vcombine.high %v789, %v805
        %v815 = vcombine.low %v796, %v812
        %v816 = vcombine.high %v796, %v812
        %v817 = vld [vmem:[#allocation2] sm:$0xff]
        %v818 = vld [vmem:[#allocation2 + $0x8] sm:$0xff]
        %821 = vrot.lane.b32.xlu0 %v817, 96
        %v822 = vpop.permute.xlu0 %821
        %823 = vrot.lane.b32.xlu0 %v818, 96
        %v824 = vpop.permute.xlu0 %823
        %827 = vrot.lane.b32.xlu0 %v817, 64
        %v828 = vpop.permute.xlu0 %827
        %829 = vrot.lane.b32.xlu0 %v818, 64
        %v830 = vpop.permute.xlu0 %829
        %833 = vrot.lane.b32.xlu0 %v817, 32
        %v834 = vpop.permute.xlu0 %833
        %835 = vrot.lane.b32.xlu0 %v818, 32
        %v836 = vpop.permute.xlu0 %835
        %v839 = vcombine.low %v817, %v828
        %v840 = vcombine.high %v817, %v828
        %v842 = vunpack.c.l.s4 1983009808
        %v843 = vunpack.c.0.s8 %v842
        %v844 = vlaneseq
        %v845 = vshrl.u32 %v844, 7
        %v846 = vsub.s32 %v843, %v845
        %v847 = vrot.slane %v839, %v846
        %v849 = vunpack.c.l.s4 1983009808
        %v850 = vunpack.c.0.s8 %v849
        %v851 = vlaneseq
        %v852 = vshrl.u32 %v851, 7
        %v853 = vsub.s32 %v850, %v852
        %v854 = vrot.slane %v840, %v853
        %v855 = vcombine.low %v822, %v834
        %v856 = vcombine.high %v822, %v834
        %v858 = vunpack.c.l.s4 1983009808
        %v859 = vunpack.c.0.s8 %v858
        %v860 = vlaneseq
        %v861 = vshrl.u32 %v860, 7
        %v862 = vsub.s32 %v859, %v861
        %v863 = vrot.slane %v855, %v862
        %v865 = vunpack.c.l.s4 1983009808
        %v866 = vunpack.c.0.s8 %v865
        %v867 = vlaneseq
        %v868 = vshrl.u32 %v867, 7
        %v869 = vsub.s32 %v866, %v868
        %v870 = vrot.slane %v856, %v869
        %v871 = vcombine.low %v847, %v863
        %v872 = vcombine.high %v847, %v863
        %v874 = vunpack.c.l.s4 1934713408
        %v875 = vunpack.c.0.s8 %v874
        %v876 = vlaneseq
        %v877 = vshrl.u32 %v876, 7
        %v878 = vsub.s32 %v875, %v877
        %v879 = vrot.slane %v871, %v878
        %v881 = vunpack.c.l.s4 1934713408
        %v882 = vunpack.c.0.s8 %v881
        %v883 = vlaneseq
        %v884 = vshrl.u32 %v883, 7
        %v885 = vsub.s32 %v882, %v884
        %v886 = vrot.slane %v872, %v885
        %v887 = vcombine.low %v854, %v870
        %v888 = vcombine.high %v854, %v870
        %v890 = vunpack.c.l.s4 1934713408
        %v891 = vunpack.c.0.s8 %v890
        %v892 = vlaneseq
        %v893 = vshrl.u32 %v892, 7
        %v894 = vsub.s32 %v891, %v893
        %v895 = vrot.slane %v887, %v894
        %v897 = vunpack.c.l.s4 1934713408
        %v898 = vunpack.c.0.s8 %v897
        %v899 = vlaneseq
        %v900 = vshrl.u32 %v899, 7
        %v901 = vsub.s32 %v898, %v900
        %v902 = vrot.slane %v888, %v901
        %v903 = vcombine.high %v879, 0.0
        %v904 = vcombine.high %v886, 0.0
        %v905 = vcombine.high %v895, 0.0
        %v906 = vcombine.high %v902, 0.0
        %v907 = vcombine.low %v818, %v830
        %v908 = vcombine.high %v818, %v830
        %v910 = vunpack.c.l.s4 1983009808
        %v911 = vunpack.c.0.s8 %v910
        %v912 = vlaneseq
        %v913 = vshrl.u32 %v912, 7
        %v914 = vsub.s32 %v911, %v913
        %v915 = vrot.slane %v907, %v914
        %v917 = vunpack.c.l.s4 1983009808
        %v918 = vunpack.c.0.s8 %v917
        %v919 = vlaneseq
        %v920 = vshrl.u32 %v919, 7
        %v921 = vsub.s32 %v918, %v920
        %v922 = vrot.slane %v908, %v921
        %v923 = vcombine.low %v824, %v836
        %v924 = vcombine.high %v824, %v836
        %v926 = vunpack.c.l.s4 1983009808
        %v927 = vunpack.c.0.s8 %v926
        %v928 = vlaneseq
        %v929 = vshrl.u32 %v928, 7
        %v930 = vsub.s32 %v927, %v929
        %v931 = vrot.slane %v923, %v930
        %v933 = vunpack.c.l.s4 1983009808
        %v934 = vunpack.c.0.s8 %v933
        %v935 = vlaneseq
        %v936 = vshrl.u32 %v935, 7
        %v937 = vsub.s32 %v934, %v936
        %v938 = vrot.slane %v924, %v937
        %v939 = vcombine.low %v915, %v931
        %v940 = vcombine.high %v915, %v931
        %v942 = vunpack.c.l.s4 1934713408
        %v943 = vunpack.c.0.s8 %v942
        %v944 = vlaneseq
        %v945 = vshrl.u32 %v944, 7
        %v946 = vsub.s32 %v943, %v945
        %v947 = vrot.slane %v939, %v946
        %v949 = vunpack.c.l.s4 1934713408
        %v950 = vunpack.c.0.s8 %v949
        %v951 = vlaneseq
        %v952 = vshrl.u32 %v951, 7
        %v953 = vsub.s32 %v950, %v952
        %v954 = vrot.slane %v940, %v953
        %v955 = vcombine.low %v922, %v938
        %v956 = vcombine.high %v922, %v938
        %v958 = vunpack.c.l.s4 1934713408
        %v959 = vunpack.c.0.s8 %v958
        %v960 = vlaneseq
        %v961 = vshrl.u32 %v960, 7
        %v962 = vsub.s32 %v959, %v961
        %v963 = vrot.slane %v955, %v962
        %v965 = vunpack.c.l.s4 1934713408
        %v966 = vunpack.c.0.s8 %v965
        %v967 = vlaneseq
        %v968 = vshrl.u32 %v967, 7
        %v969 = vsub.s32 %v966, %v968
        %v970 = vrot.slane %v956, %v969
        %v971 = vcombine.high %v947, 0.0
        %v972 = vcombine.high %v954, 0.0
        %v973 = vcombine.high %v963, 0.0
        %v974 = vcombine.high %v970, 0.0
        %v975 = vcombine.low %v879, %v886
        %v977 = vunpack.c.l.s4 1983009808
        %v978 = vunpack.c.0.s8 %v977
        %v979 = vlaneseq
        %v980 = vshrl.u32 %v979, 7
        %v981 = vsub.s32 %v978, %v980
        %v982 = vrot.slane %v975, %v981
        %v983 = vcombine.low %v903, %v904
        %v985 = vunpack.c.l.s4 1983009808
        %v986 = vunpack.c.0.s8 %v985
        %v987 = vlaneseq
        %v988 = vshrl.u32 %v987, 7
        %v989 = vsub.s32 %v986, %v988
        %v990 = vrot.slane %v983, %v989
        %v991 = vcombine.low %v895, %v902
        %v993 = vunpack.c.l.s4 1983009808
        %v994 = vunpack.c.0.s8 %v993
        %v995 = vlaneseq
        %v996 = vshrl.u32 %v995, 7
        %v997 = vsub.s32 %v994, %v996
        %v998 = vrot.slane %v991, %v997
        %v999 = vcombine.low %v905, %v906
        %v1001 = vunpack.c.l.s4 1983009808
        %v1002 = vunpack.c.0.s8 %v1001
        %v1003 = vlaneseq
        %v1004 = vshrl.u32 %v1003, 7
        %v1005 = vsub.s32 %v1002, %v1004
        %v1006 = vrot.slane %v999, %v1005
        %v1007 = vcombine.low %v982, %v990
        %v1008 = vcombine.high %v982, %v990
        %v1010 = vunpack.c.l.s4 1934713408
        %v1011 = vunpack.c.0.s8 %v1010
        %v1012 = vlaneseq
        %v1013 = vshrl.u32 %v1012, 7
        %v1014 = vsub.s32 %v1011, %v1013
        %v1015 = vrot.slane %v1007, %v1014
        %v1017 = vunpack.c.l.s4 1934713408
        %v1018 = vunpack.c.0.s8 %v1017
        %v1019 = vlaneseq
        %v1020 = vshrl.u32 %v1019, 7
        %v1021 = vsub.s32 %v1018, %v1020
        %v1022 = vrot.slane %v1008, %v1021
        %v1023 = vcombine.low %v998, %v1006
        %v1024 = vcombine.high %v998, %v1006
        %v1026 = vunpack.c.l.s4 1934713408
        %v1027 = vunpack.c.0.s8 %v1026
        %v1028 = vlaneseq
        %v1029 = vshrl.u32 %v1028, 7
        %v1030 = vsub.s32 %v1027, %v1029
        %v1031 = vrot.slane %v1023, %v1030
        %v1033 = vunpack.c.l.s4 1934713408
        %v1034 = vunpack.c.0.s8 %v1033
        %v1035 = vlaneseq
        %v1036 = vshrl.u32 %v1035, 7
        %v1037 = vsub.s32 %v1034, %v1036
        %v1038 = vrot.slane %v1024, %v1037
        %v1039 = vcombine.low %v1015, %v1031
        %v1040 = vcombine.high %v1015, %v1031
        %v1041 = vcombine.low %v1022, %v1038
        %v1042 = vcombine.high %v1022, %v1038
        %v1043 = vcombine.low %v947, %v954
        %v1045 = vunpack.c.l.s4 1983009808
        %v1046 = vunpack.c.0.s8 %v1045
        %v1047 = vlaneseq
        %v1048 = vshrl.u32 %v1047, 7
        %v1049 = vsub.s32 %v1046, %v1048
        %v1050 = vrot.slane %v1043, %v1049
        %v1051 = vcombine.low %v971, %v972
        %v1053 = vunpack.c.l.s4 1983009808
        %v1054 = vunpack.c.0.s8 %v1053
        %v1055 = vlaneseq
        %v1056 = vshrl.u32 %v1055, 7
        %v1057 = vsub.s32 %v1054, %v1056
        %v1058 = vrot.slane %v1051, %v1057
        %v1059 = vcombine.low %v963, %v970
        %v1061 = vunpack.c.l.s4 1983009808
        %v1062 = vunpack.c.0.s8 %v1061
        %v1063 = vlaneseq
        %v1064 = vshrl.u32 %v1063, 7
        %v1065 = vsub.s32 %v1062, %v1064
        %v1066 = vrot.slane %v1059, %v1065
        %v1067 = vcombine.low %v973, %v974
        %v1069 = vunpack.c.l.s4 1983009808
        %v1070 = vunpack.c.0.s8 %v1069
        %v1071 = vlaneseq
        %v1072 = vshrl.u32 %v1071, 7
        %v1073 = vsub.s32 %v1070, %v1072
        %v1074 = vrot.slane %v1067, %v1073
        %v1075 = vcombine.low %v1050, %v1058
        %v1076 = vcombine.high %v1050, %v1058
        %v1078 = vunpack.c.l.s4 1934713408
        %v1079 = vunpack.c.0.s8 %v1078
        %v1080 = vlaneseq
        %v1081 = vshrl.u32 %v1080, 7
        %v1082 = vsub.s32 %v1079, %v1081
        %v1083 = vrot.slane %v1075, %v1082
        %v1085 = vunpack.c.l.s4 1934713408
        %v1086 = vunpack.c.0.s8 %v1085
        %v1087 = vlaneseq
        %v1088 = vshrl.u32 %v1087, 7
        %v1089 = vsub.s32 %v1086, %v1088
        %v1090 = vrot.slane %v1076, %v1089
        %v1091 = vcombine.low %v1066, %v1074
        %v1092 = vcombine.high %v1066, %v1074
        %v1094 = vunpack.c.l.s4 1934713408
        %v1095 = vunpack.c.0.s8 %v1094
        %v1096 = vlaneseq
        %v1097 = vshrl.u32 %v1096, 7
        %v1098 = vsub.s32 %v1095, %v1097
        %v1099 = vrot.slane %v1091, %v1098
        %v1101 = vunpack.c.l.s4 1934713408
        %v1102 = vunpack.c.0.s8 %v1101
        %v1103 = vlaneseq
        %v1104 = vshrl.u32 %v1103, 7
        %v1105 = vsub.s32 %v1102, %v1104
        %v1106 = vrot.slane %v1092, %v1105
        %v1107 = vcombine.low %v1083, %v1099
        %v1108 = vcombine.high %v1083, %v1099
        %v1109 = vcombine.low %v1090, %v1106
        %v1110 = vcombine.high %v1090, %v1106
        %v1111 = vld [vmem:[#allocation3] sm:$0xff]
        %v1112 = vld [vmem:[#allocation3 + $0x8] sm:$0xff]
        %1115 = vrot.lane.b32.xlu0 %v1111, 96
        %v1116 = vpop.permute.xlu0 %1115
        %1117 = vrot.lane.b32.xlu0 %v1112, 96
        %v1118 = vpop.permute.xlu0 %1117
        %1121 = vrot.lane.b32.xlu0 %v1111, 64
        %v1122 = vpop.permute.xlu0 %1121
        %1123 = vrot.lane.b32.xlu0 %v1112, 64
        %v1124 = vpop.permute.xlu0 %1123
        %1127 = vrot.lane.b32.xlu0 %v1111, 32
        %v1128 = vpop.permute.xlu0 %1127
        %1129 = vrot.lane.b32.xlu0 %v1112, 32
        %v1130 = vpop.permute.xlu0 %1129
        %v1133 = vcombine.low %v1111, %v1122
        %v1134 = vcombine.high %v1111, %v1122
        %v1136 = vunpack.c.l.s4 1983009808
        %v1137 = vunpack.c.0.s8 %v1136
        %v1138 = vlaneseq
        %v1139 = vshrl.u32 %v1138, 7
        %v1140 = vsub.s32 %v1137, %v1139
        %v1141 = vrot.slane %v1133, %v1140
        %v1143 = vunpack.c.l.s4 1983009808
        %v1144 = vunpack.c.0.s8 %v1143
        %v1145 = vlaneseq
        %v1146 = vshrl.u32 %v1145, 7
        %v1147 = vsub.s32 %v1144, %v1146
        %v1148 = vrot.slane %v1134, %v1147
        %v1149 = vcombine.low %v1116, %v1128
        %v1150 = vcombine.high %v1116, %v1128
        %v1152 = vunpack.c.l.s4 1983009808
        %v1153 = vunpack.c.0.s8 %v1152
        %v1154 = vlaneseq
        %v1155 = vshrl.u32 %v1154, 7
        %v1156 = vsub.s32 %v1153, %v1155
        %v1157 = vrot.slane %v1149, %v1156
        %v1159 = vunpack.c.l.s4 1983009808
        %v1160 = vunpack.c.0.s8 %v1159
        %v1161 = vlaneseq
        %v1162 = vshrl.u32 %v1161, 7
        %v1163 = vsub.s32 %v1160, %v1162
        %v1164 = vrot.slane %v1150, %v1163
        %v1165 = vcombine.low %v1141, %v1157
        %v1166 = vcombine.high %v1141, %v1157
        %v1168 = vunpack.c.l.s4 1934713408
        %v1169 = vunpack.c.0.s8 %v1168
        %v1170 = vlaneseq
        %v1171 = vshrl.u32 %v1170, 7
        %v1172 = vsub.s32 %v1169, %v1171
        %v1173 = vrot.slane %v1165, %v1172
        %v1175 = vunpack.c.l.s4 1934713408
        %v1176 = vunpack.c.0.s8 %v1175
        %v1177 = vlaneseq
        %v1178 = vshrl.u32 %v1177, 7
        %v1179 = vsub.s32 %v1176, %v1178
        %v1180 = vrot.slane %v1166, %v1179
        %v1181 = vcombine.low %v1148, %v1164
        %v1182 = vcombine.high %v1148, %v1164
        %v1184 = vunpack.c.l.s4 1934713408
        %v1185 = vunpack.c.0.s8 %v1184
        %v1186 = vlaneseq
        %v1187 = vshrl.u32 %v1186, 7
        %v1188 = vsub.s32 %v1185, %v1187
        %v1189 = vrot.slane %v1181, %v1188
        %v1191 = vunpack.c.l.s4 1934713408
        %v1192 = vunpack.c.0.s8 %v1191
        %v1193 = vlaneseq
        %v1194 = vshrl.u32 %v1193, 7
        %v1195 = vsub.s32 %v1192, %v1194
        %v1196 = vrot.slane %v1182, %v1195
        %v1197 = vcombine.high %v1173, 0.0
        %v1198 = vcombine.high %v1180, 0.0
        %v1199 = vcombine.high %v1189, 0.0
        %v1200 = vcombine.high %v1196, 0.0
        %v1201 = vcombine.low %v1112, %v1124
        %v1202 = vcombine.high %v1112, %v1124
        %v1204 = vunpack.c.l.s4 1983009808
        %v1205 = vunpack.c.0.s8 %v1204
        %v1206 = vlaneseq
        %v1207 = vshrl.u32 %v1206, 7
        %v1208 = vsub.s32 %v1205, %v1207
        %v1209 = vrot.slane %v1201, %v1208
        %v1211 = vunpack.c.l.s4 1983009808
        %v1212 = vunpack.c.0.s8 %v1211
        %v1213 = vlaneseq
        %v1214 = vshrl.u32 %v1213, 7
        %v1215 = vsub.s32 %v1212, %v1214
        %v1216 = vrot.slane %v1202, %v1215
        %v1217 = vcombine.low %v1118, %v1130
        %v1218 = vcombine.high %v1118, %v1130
        %v1220 = vunpack.c.l.s4 1983009808
        %v1221 = vunpack.c.0.s8 %v1220
        %v1222 = vlaneseq
        %v1223 = vshrl.u32 %v1222, 7
        %v1224 = vsub.s32 %v1221, %v1223
        %v1225 = vrot.slane %v1217, %v1224
        %v1227 = vunpack.c.l.s4 1983009808
        %v1228 = vunpack.c.0.s8 %v1227
        %v1229 = vlaneseq
        %v1230 = vshrl.u32 %v1229, 7
        %v1231 = vsub.s32 %v1228, %v1230
        %v1232 = vrot.slane %v1218, %v1231
        %v1233 = vcombine.low %v1209, %v1225
        %v1234 = vcombine.high %v1209, %v1225
        %v1236 = vunpack.c.l.s4 1934713408
        %v1237 = vunpack.c.0.s8 %v1236
        %v1238 = vlaneseq
        %v1239 = vshrl.u32 %v1238, 7
        %v1240 = vsub.s32 %v1237, %v1239
        %v1241 = vrot.slane %v1233, %v1240
        %v1243 = vunpack.c.l.s4 1934713408
        %v1244 = vunpack.c.0.s8 %v1243
        %v1245 = vlaneseq
        %v1246 = vshrl.u32 %v1245, 7
        %v1247 = vsub.s32 %v1244, %v1246
        %v1248 = vrot.slane %v1234, %v1247
        %v1249 = vcombine.low %v1216, %v1232
        %v1250 = vcombine.high %v1216, %v1232
        %v1252 = vunpack.c.l.s4 1934713408
        %v1253 = vunpack.c.0.s8 %v1252
        %v1254 = vlaneseq
        %v1255 = vshrl.u32 %v1254, 7
        %v1256 = vsub.s32 %v1253, %v1255
        %v1257 = vrot.slane %v1249, %v1256
        %v1259 = vunpack.c.l.s4 1934713408
        %v1260 = vunpack.c.0.s8 %v1259
        %v1261 = vlaneseq
        %v1262 = vshrl.u32 %v1261, 7
        %v1263 = vsub.s32 %v1260, %v1262
        %v1264 = vrot.slane %v1250, %v1263
        %v1265 = vcombine.high %v1241, 0.0
        %v1266 = vcombine.high %v1248, 0.0
        %v1267 = vcombine.high %v1257, 0.0
        %v1268 = vcombine.high %v1264, 0.0
        %v1269 = vcombine.low %v1173, %v1180
        %v1271 = vunpack.c.l.s4 1983009808
        %v1272 = vunpack.c.0.s8 %v1271
        %v1273 = vlaneseq
        %v1274 = vshrl.u32 %v1273, 7
        %v1275 = vsub.s32 %v1272, %v1274
        %v1276 = vrot.slane %v1269, %v1275
        %v1277 = vcombine.low %v1197, %v1198
        %v1279 = vunpack.c.l.s4 1983009808
        %v1280 = vunpack.c.0.s8 %v1279
        %v1281 = vlaneseq
        %v1282 = vshrl.u32 %v1281, 7
        %v1283 = vsub.s32 %v1280, %v1282
        %v1284 = vrot.slane %v1277, %v1283
        %v1285 = vcombine.low %v1189, %v1196
        %v1287 = vunpack.c.l.s4 1983009808
        %v1288 = vunpack.c.0.s8 %v1287
        %v1289 = vlaneseq
        %v1290 = vshrl.u32 %v1289, 7
        %v1291 = vsub.s32 %v1288, %v1290
        %v1292 = vrot.slane %v1285, %v1291
        %v1293 = vcombine.low %v1199, %v1200
        %v1295 = vunpack.c.l.s4 1983009808
        %v1296 = vunpack.c.0.s8 %v1295
        %v1297 = vlaneseq
        %v1298 = vshrl.u32 %v1297, 7
        %v1299 = vsub.s32 %v1296, %v1298
        %v1300 = vrot.slane %v1293, %v1299
        %v1301 = vcombine.low %v1276, %v1284
        %v1302 = vcombine.high %v1276, %v1284
        %v1304 = vunpack.c.l.s4 1934713408
        %v1305 = vunpack.c.0.s8 %v1304
        %v1306 = vlaneseq
        %v1307 = vshrl.u32 %v1306, 7
        %v1308 = vsub.s32 %v1305, %v1307
        %v1309 = vrot.slane %v1301, %v1308
        %v1311 = vunpack.c.l.s4 1934713408
        %v1312 = vunpack.c.0.s8 %v1311
        %v1313 = vlaneseq
        %v1314 = vshrl.u32 %v1313, 7
        %v1315 = vsub.s32 %v1312, %v1314
        %v1316 = vrot.slane %v1302, %v1315
        %v1317 = vcombine.low %v1292, %v1300
        %v1318 = vcombine.high %v1292, %v1300
        %v1320 = vunpack.c.l.s4 1934713408
        %v1321 = vunpack.c.0.s8 %v1320
        %v1322 = vlaneseq
        %v1323 = vshrl.u32 %v1322, 7
        %v1324 = vsub.s32 %v1321, %v1323
        %v1325 = vrot.slane %v1317, %v1324
        %v1327 = vunpack.c.l.s4 1934713408
        %v1328 = vunpack.c.0.s8 %v1327
        %v1329 = vlaneseq
        %v1330 = vshrl.u32 %v1329, 7
        %v1331 = vsub.s32 %v1328, %v1330
        %v1332 = vrot.slane %v1318, %v1331
        %v1333 = vcombine.low %v1309, %v1325
        %v1334 = vcombine.high %v1309, %v1325
        %v1335 = vcombine.low %v1316, %v1332
        %v1336 = vcombine.high %v1316, %v1332
        %v1337 = vcombine.low %v1241, %v1248
        %v1339 = vunpack.c.l.s4 1983009808
        %v1340 = vunpack.c.0.s8 %v1339
        %v1341 = vlaneseq
        %v1342 = vshrl.u32 %v1341, 7
        %v1343 = vsub.s32 %v1340, %v1342
        %v1344 = vrot.slane %v1337, %v1343
        %v1345 = vcombine.low %v1265, %v1266
        %v1347 = vunpack.c.l.s4 1983009808
        %v1348 = vunpack.c.0.s8 %v1347
        %v1349 = vlaneseq
        %v1350 = vshrl.u32 %v1349, 7
        %v1351 = vsub.s32 %v1348, %v1350
        %v1352 = vrot.slane %v1345, %v1351
        %v1353 = vcombine.low %v1257, %v1264
        %v1355 = vunpack.c.l.s4 1983009808
        %v1356 = vunpack.c.0.s8 %v1355
        %v1357 = vlaneseq
        %v1358 = vshrl.u32 %v1357, 7
        %v1359 = vsub.s32 %v1356, %v1358
        %v1360 = vrot.slane %v1353, %v1359
        %v1361 = vcombine.low %v1267, %v1268
        %v1363 = vunpack.c.l.s4 1983009808
        %v1364 = vunpack.c.0.s8 %v1363
        %v1365 = vlaneseq
        %v1366 = vshrl.u32 %v1365, 7
        %v1367 = vsub.s32 %v1364, %v1366
        %v1368 = vrot.slane %v1361, %v1367
        %v1369 = vcombine.low %v1344, %v1352
        %v1370 = vcombine.high %v1344, %v1352
        %v1372 = vunpack.c.l.s4 1934713408
        %v1373 = vunpack.c.0.s8 %v1372
        %v1374 = vlaneseq
        %v1375 = vshrl.u32 %v1374, 7
        %v1376 = vsub.s32 %v1373, %v1375
        %v1377 = vrot.slane %v1369, %v1376
        %v1379 = vunpack.c.l.s4 1934713408
        %v1380 = vunpack.c.0.s8 %v1379
        %v1381 = vlaneseq
        %v1382 = vshrl.u32 %v1381, 7
        %v1383 = vsub.s32 %v1380, %v1382
        %v1384 = vrot.slane %v1370, %v1383
        %v1385 = vcombine.low %v1360, %v1368
        %v1386 = vcombine.high %v1360, %v1368
        %v1388 = vunpack.c.l.s4 1934713408
        %v1389 = vunpack.c.0.s8 %v1388
        %v1390 = vlaneseq
        %v1391 = vshrl.u32 %v1390, 7
        %v1392 = vsub.s32 %v1389, %v1391
        %v1393 = vrot.slane %v1385, %v1392
        %v1395 = vunpack.c.l.s4 1934713408
        %v1396 = vunpack.c.0.s8 %v1395
        %v1397 = vlaneseq
        %v1398 = vshrl.u32 %v1397, 7
        %v1399 = vsub.s32 %v1396, %v1398
        %v1400 = vrot.slane %v1386, %v1399
        %v1401 = vcombine.low %v1377, %v1393
        %v1402 = vcombine.high %v1377, %v1393
        %v1403 = vcombine.low %v1384, %v1400
        %v1404 = vcombine.high %v1384, %v1400
        %vm1405 = vcmask 261120
        %v1407 = vsel %vm1405, %v813, 0
        %v1410 = vsel %vm1405, %v1039, 0
        %v1413 = vsel %vm1405, %v1107, 0
        %1415 = vmatprep.subr.mxu0 0.0
        %1416 = vmatpush1.xpose.msra.mxu0 %v1410
        %1417 = vmatprep.subr.mxu0 0.0
        %1418 = vmatpush1.xpose.msra.mxu0 %v1413
        %1419 = vmatprep.subr.mxu0 0.0
        %1420 = vmatpush1.xpose.msra.mxu0 0.0
        %1421 = vmatprep.subr.mxu0 0.0
        %1422 = vmatpush1.xpose.msra.mxu0 0.0
        %1423 = vmatprep.subr.mxu0 0.0
        %1424 = vmatpush1.xpose.msra.mxu0 0.0
        %1425 = vmatprep.subr.mxu0 0.0
        %1426 = vmatpush1.xpose.msra.mxu0 0.0
        %1427 = vmatprep.subr.mxu0 0.0
        %1428 = vmatpush1.xpose.msra.mxu0 0.0
        %1429 = vmatprep.subr.mxu0 0.0
        %1430 = vmatpush1.xpose.msra.mxu0 0.0
        %1431 = vmatprep.subr.mxu0 0.0
        %1432 = vmatpush1.xpose.msra.mxu0 0.0
        %1433 = vmatprep.subr.mxu0 0.0
        %1434 = vmatpush1.xpose.msra.mxu0 0.0
        %1435 = vmatprep.subr.mxu0 0.0
        %1436 = vmatpush1.xpose.msra.mxu0 0.0
        %1437 = vmatprep.subr.mxu0 0.0
        %1438 = vmatpush1.xpose.msra.mxu0 0.0
        %1439 = vmatprep.subr.mxu0 0.0
        %1440 = vmatpush1.xpose.msra.mxu0 0.0
        %1441 = vmatprep.subr.mxu0 0.0
        %1442 = vmatpush1.xpose.msra.mxu0 0.0
        %1443 = vmatprep.subr.mxu0 0.0
        %1444 = vmatpush1.xpose.msra.mxu0 0.0
        %1445 = vmatprep.subr.mxu0 0.0
        %1446 = vmatpush1.xpose.msra.mxu0 0.0
        %1447 = vmatprep.subr.mxu0 0.0
        %1448 = vmatpush1.xpose.msra.mxu0 0.0
        %1449 = vmatprep.subr.mxu0 0.0
        %1450 = vmatpush1.xpose.msra.mxu0 0.0
        %1451 = vmatprep.subr.mxu0 0.0
        %1452 = vmatpush1.xpose.msra.mxu0 0.0
        %1453 = vmatprep.subr.mxu0 0.0
        %1454 = vmatpush1.xpose.msra.mxu0 0.0
        %1455 = vmatprep.subr.mxu0 0.0
        %1456 = vmatpush1.xpose.msra.mxu0 0.0
        %1457 = vmatprep.subr.mxu0 0.0
        %1458 = vmatpush1.xpose.msra.mxu0 0.0
        %1459 = vmatprep.subr.mxu0 0.0
        %1460 = vmatpush1.xpose.msra.mxu0 0.0
        %1461 = vmatprep.subr.mxu0 0.0
        %1462 = vmatpush1.xpose.msra.mxu0 0.0
        %1463 = vmatprep.subr.mxu0 0.0
        %1464 = vmatpush1.xpose.msra.mxu0 0.0
        %1465 = vmatprep.subr.mxu0 0.0
        %1466 = vmatpush1.xpose.msra.mxu0 0.0
        %1467 = vmatprep.subr.mxu0 0.0
        %1468 = vmatpush1.xpose.msra.mxu0 0.0
        %1469 = vmatprep.subr.mxu0 0.0
        %1470 = vmatpush1.xpose.msra.mxu0 0.0
        %1471 = vmatprep.subr.mxu0 0.0
        %1472 = vmatpush1.xpose.msra.mxu0 0.0
        %1473 = vmatprep.subr.mxu0 0.0
        %1474 = vmatpush1.xpose.msra.mxu0 0.0
        %1475 = vmatprep.subr.mxu0 0.0
        %1476 = vmatpush1.xpose.msra.mxu0 0.0
        %1477 = vmatprep.subr.mxu0 0.0
        %1478 = vmatpush1.xpose.msra.mxu0 0.0
        %1479 = vmatprep.mubr.f32.mxu0 0.0
        %1480 = vmatmul.mubr.f32.gmra.mrb[0].mxu0 %v1407
        %v1481 = vpop.f32.mrb[0].mxu0
        %v1482 = vadd.f32 0.0, %v1481
        %v1483 = vpop.f32.mrb[0].mxu0
        %1484 = vdwg.mxu0
        %v1486 = vsel %vm1405, %v814, 0
        %v1489 = vsel %vm1405, %v1040, 0
        %v1492 = vsel %vm1405, %v1108, 0
        %1494 = vmatprep.subr.mxu0 0.0
        %1495 = vmatpush1.xpose.msra.mxu0 %v1489
        %1496 = vmatprep.subr.mxu0 0.0
        %1497 = vmatpush1.xpose.msra.mxu0 %v1492
        %1498 = vmatprep.subr.mxu0 0.0
        %1499 = vmatpush1.xpose.msra.mxu0 0.0
        %1500 = vmatprep.subr.mxu0 0.0
        %1501 = vmatpush1.xpose.msra.mxu0 0.0
        %1502 = vmatprep.subr.mxu0 0.0
        %1503 = vmatpush1.xpose.msra.mxu0 0.0
        %1504 = vmatprep.subr.mxu0 0.0
        %1505 = vmatpush1.xpose.msra.mxu0 0.0
        %1506 = vmatprep.subr.mxu0 0.0
        %1507 = vmatpush1.xpose.msra.mxu0 0.0
        %1508 = vmatprep.subr.mxu0 0.0
        %1509 = vmatpush1.xpose.msra.mxu0 0.0
        %1510 = vmatprep.subr.mxu0 0.0
        %1511 = vmatpush1.xpose.msra.mxu0 0.0
        %1512 = vmatprep.subr.mxu0 0.0
        %1513 = vmatpush1.xpose.msra.mxu0 0.0
        %1514 = vmatprep.subr.mxu0 0.0
        %1515 = vmatpush1.xpose.msra.mxu0 0.0
        %1516 = vmatprep.subr.mxu0 0.0
        %1517 = vmatpush1.xpose.msra.mxu0 0.0
        %1518 = vmatprep.subr.mxu0 0.0
        %1519 = vmatpush1.xpose.msra.mxu0 0.0
        %1520 = vmatprep.subr.mxu0 0.0
        %1521 = vmatpush1.xpose.msra.mxu0 0.0
        %1522 = vmatprep.subr.mxu0 0.0
        %1523 = vmatpush1.xpose.msra.mxu0 0.0
        %1524 = vmatprep.subr.mxu0 0.0
        %1525 = vmatpush1.xpose.msra.mxu0 0.0
        %1526 = vmatprep.subr.mxu0 0.0
        %1527 = vmatpush1.xpose.msra.mxu0 0.0
        %1528 = vmatprep.subr.mxu0 0.0
        %1529 = vmatpush1.xpose.msra.mxu0 0.0
        %1530 = vmatprep.subr.mxu0 0.0
        %1531 = vmatpush1.xpose.msra.mxu0 0.0
        %1532 = vmatprep.subr.mxu0 0.0
        %1533 = vmatpush1.xpose.msra.mxu0 0.0
        %1534 = vmatprep.subr.mxu0 0.0
        %1535 = vmatpush1.xpose.msra.mxu0 0.0
        %1536 = vmatprep.subr.mxu0 0.0
        %1537 = vmatpush1.xpose.msra.mxu0 0.0
        %1538 = vmatprep.subr.mxu0 0.0
        %1539 = vmatpush1.xpose.msra.mxu0 0.0
        %1540 = vmatprep.subr.mxu0 0.0
        %1541 = vmatpush1.xpose.msra.mxu0 0.0
        %1542 = vmatprep.subr.mxu0 0.0
        %1543 = vmatpush1.xpose.msra.mxu0 0.0
        %1544 = vmatprep.subr.mxu0 0.0
        %1545 = vmatpush1.xpose.msra.mxu0 0.0
        %1546 = vmatprep.subr.mxu0 0.0
        %1547 = vmatpush1.xpose.msra.mxu0 0.0
        %1548 = vmatprep.subr.mxu0 0.0
        %1549 = vmatpush1.xpose.msra.mxu0 0.0
        %1550 = vmatprep.subr.mxu0 0.0
        %1551 = vmatpush1.xpose.msra.mxu0 0.0
        %1552 = vmatprep.subr.mxu0 0.0
        %1553 = vmatpush1.xpose.msra.mxu0 0.0
        %1554 = vmatprep.subr.mxu0 0.0
        %1555 = vmatpush1.xpose.msra.mxu0 0.0
        %1556 = vmatprep.subr.mxu0 0.0
        %1557 = vmatpush1.xpose.msra.mxu0 0.0
        %1558 = vmatprep.mubr.f32.mxu0 0.0
        %1559 = vmatmul.mubr.f32.gmra.mrb[0].mxu0 %v1486
        %v1560 = vpop.f32.mrb[0].mxu0
        %v1561 = vadd.f32 0.0, %v1560
        %v1562 = vpop.f32.mrb[0].mxu0
        %1563 = vdwg.mxu0
        %v1565 = vsel %vm1405, %v815, 0
        %v1568 = vsel %vm1405, %v1041, 0
        %v1571 = vsel %vm1405, %v1109, 0
        %1573 = vmatprep.subr.mxu0 0.0
        %1574 = vmatpush1.xpose.msra.mxu0 %v1568
        %1575 = vmatprep.subr.mxu0 0.0
        %1576 = vmatpush1.xpose.msra.mxu0 %v1571
        %1577 = vmatprep.subr.mxu0 0.0
        %1578 = vmatpush1.xpose.msra.mxu0 0.0
        %1579 = vmatprep.subr.mxu0 0.0
        %1580 = vmatpush1.xpose.msra.mxu0 0.0
        %1581 = vmatprep.subr.mxu0 0.0
        %1582 = vmatpush1.xpose.msra.mxu0 0.0
        %1583 = vmatprep.subr.mxu0 0.0
        %1584 = vmatpush1.xpose.msra.mxu0 0.0
        %1585 = vmatprep.subr.mxu0 0.0
        %1586 = vmatpush1.xpose.msra.mxu0 0.0
        %1587 = vmatprep.subr.mxu0 0.0
        %1588 = vmatpush1.xpose.msra.mxu0 0.0
        %1589 = vmatprep.subr.mxu0 0.0
        %1590 = vmatpush1.xpose.msra.mxu0 0.0
        %1591 = vmatprep.subr.mxu0 0.0
        %1592 = vmatpush1.xpose.msra.mxu0 0.0
        %1593 = vmatprep.subr.mxu0 0.0
        %1594 = vmatpush1.xpose.msra.mxu0 0.0
        %1595 = vmatprep.subr.mxu0 0.0
        %1596 = vmatpush1.xpose.msra.mxu0 0.0
        %1597 = vmatprep.subr.mxu0 0.0
        %1598 = vmatpush1.xpose.msra.mxu0 0.0
        %1599 = vmatprep.subr.mxu0 0.0
        %1600 = vmatpush1.xpose.msra.mxu0 0.0
        %1601 = vmatprep.subr.mxu0 0.0
        %1602 = vmatpush1.xpose.msra.mxu0 0.0
        %1603 = vmatprep.subr.mxu0 0.0
        %1604 = vmatpush1.xpose.msra.mxu0 0.0
        %1605 = vmatprep.subr.mxu0 0.0
        %1606 = vmatpush1.xpose.msra.mxu0 0.0
        %1607 = vmatprep.subr.mxu0 0.0
        %1608 = vmatpush1.xpose.msra.mxu0 0.0
        %1609 = vmatprep.subr.mxu0 0.0
        %1610 = vmatpush1.xpose.msra.mxu0 0.0
        %1611 = vmatprep.subr.mxu0 0.0
        %1612 = vmatpush1.xpose.msra.mxu0 0.0
        %1613 = vmatprep.subr.mxu0 0.0
        %1614 = vmatpush1.xpose.msra.mxu0 0.0
        %1615 = vmatprep.subr.mxu0 0.0
        %1616 = vmatpush1.xpose.msra.mxu0 0.0
        %1617 = vmatprep.subr.mxu0 0.0
        %1618 = vmatpush1.xpose.msra.mxu0 0.0
        %1619 = vmatprep.subr.mxu0 0.0
        %1620 = vmatpush1.xpose.msra.mxu0 0.0
        %1621 = vmatprep.subr.mxu0 0.0
        %1622 = vmatpush1.xpose.msra.mxu0 0.0
        %1623 = vmatprep.subr.mxu0 0.0
        %1624 = vmatpush1.xpose.msra.mxu0 0.0
        %1625 = vmatprep.subr.mxu0 0.0
        %1626 = vmatpush1.xpose.msra.mxu0 0.0
        %1627 = vmatprep.subr.mxu0 0.0
        %1628 = vmatpush1.xpose.msra.mxu0 0.0
        %1629 = vmatprep.subr.mxu0 0.0
        %1630 = vmatpush1.xpose.msra.mxu0 0.0
        %1631 = vmatprep.subr.mxu0 0.0
        %1632 = vmatpush1.xpose.msra.mxu0 0.0
        %1633 = vmatprep.subr.mxu0 0.0
        %1634 = vmatpush1.xpose.msra.mxu0 0.0
        %1635 = vmatprep.subr.mxu0 0.0
        %1636 = vmatpush1.xpose.msra.mxu0 0.0
        %1637 = vmatprep.mubr.f32.mxu0 0.0
        %1638 = vmatmul.mubr.f32.gmra.mrb[0].mxu0 %v1565
        %v1639 = vpop.f32.mrb[0].mxu0
        %v1640 = vadd.f32 0.0, %v1639
        %v1641 = vpop.f32.mrb[0].mxu0
        %1642 = vdwg.mxu0
        %v1644 = vsel %vm1405, %v816, 0
        %v1647 = vsel %vm1405, %v1042, 0
        %v1650 = vsel %vm1405, %v1110, 0
        %1652 = vmatprep.subr.mxu0 0.0
        %1653 = vmatpush1.xpose.msra.mxu0 %v1647
        %1654 = vmatprep.subr.mxu0 0.0
        %1655 = vmatpush1.xpose.msra.mxu0 %v1650
        %1656 = vmatprep.subr.mxu0 0.0
        %1657 = vmatpush1.xpose.msra.mxu0 0.0
        %1658 = vmatprep.subr.mxu0 0.0
        %1659 = vmatpush1.xpose.msra.mxu0 0.0
        %1660 = vmatprep.subr.mxu0 0.0
        %1661 = vmatpush1.xpose.msra.mxu0 0.0
        %1662 = vmatprep.subr.mxu0 0.0
        %1663 = vmatpush1.xpose.msra.mxu0 0.0
        %1664 = vmatprep.subr.mxu0 0.0
        %1665 = vmatpush1.xpose.msra.mxu0 0.0
        %1666 = vmatprep.subr.mxu0 0.0
        %1667 = vmatpush1.xpose.msra.mxu0 0.0
        %1668 = vmatprep.subr.mxu0 0.0
        %1669 = vmatpush1.xpose.msra.mxu0 0.0
        %1670 = vmatprep.subr.mxu0 0.0
        %1671 = vmatpush1.xpose.msra.mxu0 0.0
        %1672 = vmatprep.subr.mxu0 0.0
        %1673 = vmatpush1.xpose.msra.mxu0 0.0
        %1674 = vmatprep.subr.mxu0 0.0
        %1675 = vmatpush1.xpose.msra.mxu0 0.0
        %1676 = vmatprep.subr.mxu0 0.0
        %1677 = vmatpush1.xpose.msra.mxu0 0.0
        %1678 = vmatprep.subr.mxu0 0.0
        %1679 = vmatpush1.xpose.msra.mxu0 0.0
        %1680 = vmatprep.subr.mxu0 0.0
        %1681 = vmatpush1.xpose.msra.mxu0 0.0
        %1682 = vmatprep.subr.mxu0 0.0
        %1683 = vmatpush1.xpose.msra.mxu0 0.0
        %1684 = vmatprep.subr.mxu0 0.0
        %1685 = vmatpush1.xpose.msra.mxu0 0.0
        %1686 = vmatprep.subr.mxu0 0.0
        %1687 = vmatpush1.xpose.msra.mxu0 0.0
        %1688 = vmatprep.subr.mxu0 0.0
        %1689 = vmatpush1.xpose.msra.mxu0 0.0
        %1690 = vmatprep.subr.mxu0 0.0
        %1691 = vmatpush1.xpose.msra.mxu0 0.0
        %1692 = vmatprep.subr.mxu0 0.0
        %1693 = vmatpush1.xpose.msra.mxu0 0.0
        %1694 = vmatprep.subr.mxu0 0.0
        %1695 = vmatpush1.xpose.msra.mxu0 0.0
        %1696 = vmatprep.subr.mxu0 0.0
        %1697 = vmatpush1.xpose.msra.mxu0 0.0
        %1698 = vmatprep.subr.mxu0 0.0
        %1699 = vmatpush1.xpose.msra.mxu0 0.0
        %1700 = vmatprep.subr.mxu0 0.0
        %1701 = vmatpush1.xpose.msra.mxu0 0.0
        %1702 = vmatprep.subr.mxu0 0.0
        %1703 = vmatpush1.xpose.msra.mxu0 0.0
        %1704 = vmatprep.subr.mxu0 0.0
        %1705 = vmatpush1.xpose.msra.mxu0 0.0
        %1706 = vmatprep.subr.mxu0 0.0
        %1707 = vmatpush1.xpose.msra.mxu0 0.0
        %1708 = vmatprep.subr.mxu0 0.0
        %1709 = vmatpush1.xpose.msra.mxu0 0.0
        %1710 = vmatprep.subr.mxu0 0.0
        %1711 = vmatpush1.xpose.msra.mxu0 0.0
        %1712 = vmatprep.subr.mxu0 0.0
        %1713 = vmatpush1.xpose.msra.mxu0 0.0
        %1714 = vmatprep.subr.mxu0 0.0
        %1715 = vmatpush1.xpose.msra.mxu0 0.0
        %1716 = vmatprep.mubr.f32.mxu0 0.0
        %1717 = vmatmul.mubr.f32.gmra.mrb[0].mxu0 %v1644
        %v1718 = vpop.f32.mrb[0].mxu0
        %v1719 = vadd.f32 0.0, %v1718
        %v1720 = vpop.f32.mrb[0].mxu0
        %1721 = vdwg.mxu0
        %s1722 = smul.u32 %s33, 8
        %v1723 = vlaneseq
        %v1724 = vshrl.u32 %v1723, 7
        %v1725 = vstv %s1722
        %v1726 = vadd.s32 %v1725, %v1724
        %v1727 = vlaneseq
        %v1728 = vand.u32 %v1727, 127
        %vm1729 = vcmp.ge.s32.totalorder %v1726, %v1728
        %v1730 = vsel %vm1729, 1, 0
        %vm1731 = vcmp.eq.s32.totalorder %v1730, 1
        %v1732 = vsel %vm1731, %v1482, -1e+30
        %v1733 = vsel %vm1731, %v1561, -1e+30
        %v1734 = vsel %vm1731, %v1640, -1e+30
        %v1735 = vsel %vm1731, %v1719, -1e+30
        %vm1736 = vcmask 130048
        %v1737 = vsel %vm1736, %v1732, -inf
        %1738 = vmax.xlane.f32.xlu0 %v1737
        %v1739 = vpop.xlane.xlu0 %1738
        %v1740 = vsel %vm1736, %v1733, -inf
        %1741 = vmax.xlane.f32.xlu0 %v1740
        %v1742 = vpop.xlane.xlu0 %1741
        %v1743 = vsel %vm1736, %v1734, -inf
        %1744 = vmax.xlane.f32.xlu0 %v1743
        %v1745 = vpop.xlane.xlu0 %1744
        %v1746 = vsel %vm1736, %v1735, -inf
        %1747 = vmax.xlane.f32.xlu0 %v1746
        %v1748 = vpop.xlane.xlu0 %1747
        %v1749 = vsub.f32 %v1732, %v1739
        %v1750 = vsub.f32 %v1733, %v1742
        %v1751 = vsub.f32 %v1734, %v1745
        %v1752 = vsub.f32 %v1735, %v1748
        %v1753 = vmul.f32 %v1749, 1.442695
        %v1754 = vpow.pop %v1753
        %v1755 = vmul.f32 %v1750, 1.442695
        %v1756 = vpow.pop %v1755
        %v1757 = vmul.f32 %v1751, 1.442695
        %v1758 = vpow.pop %v1757
        %v1759 = vmul.f32 %v1752, 1.442695
        %v1760 = vpow.pop %v1759
        %v1761 = vsel %vm1736, %v1754, 0.0
        %1762 = vadd.xlane.f32.xlu0 %v1761
        %v1763 = vpop.xlane.xlu0 %1762
        %v1764 = vsel %vm1736, %v1756, 0.0
        %1765 = vadd.xlane.f32.xlu0 %v1764
        %v1766 = vpop.xlane.xlu0 %1765
        %v1767 = vsel %vm1736, %v1758, 0.0
        %1768 = vadd.xlane.f32.xlu0 %v1767
        %v1769 = vpop.xlane.xlu0 %1768
        %v1770 = vsel %vm1736, %v1760, 0.0
        %1771 = vadd.xlane.f32.xlu0 %v1770
        %v1772 = vpop.xlane.xlu0 %1771
        %v1773 = vrcp.pop %v1763
        %v1774 = vrcp.pop %v1766
        %v1775 = vrcp.pop %v1769
        %v1776 = vrcp.pop %v1772
        %v1777 = vmul.f32 %v1754, %v1773
        %v1778 = vmul.f32 %v1756, %v1774
        %v1779 = vmul.f32 %v1758, %v1775
        %v1780 = vmul.f32 %v1760, %v1776
        %v1782 = vsel %vm1736, %v1777, 0
        %1784 = vmatprep.subr.mxu0 0.0
        %1785 = vmatpush1.msra.mxu0 %v1333
        %1786 = vmatprep.subr.mxu0 0.0
        %1787 = vmatpush1.msra.mxu0 %v1401
        %1788 = vmatprep.subr.mxu0 0.0
        %1789 = vmatpush1.msra.mxu0 0.0
        %1790 = vmatprep.subr.mxu0 0.0
        %1791 = vmatpush1.msra.mxu0 0.0
        %1792 = vmatprep.subr.mxu0 0.0
        %1793 = vmatpush1.msra.mxu0 0.0
        %1794 = vmatprep.subr.mxu0 0.0
        %1795 = vmatpush1.msra.mxu0 0.0
        %1796 = vmatprep.subr.mxu0 0.0
        %1797 = vmatpush1.msra.mxu0 0.0
        %1798 = vmatprep.subr.mxu0 0.0
        %1799 = vmatpush1.msra.mxu0 0.0
        %1800 = vmatprep.subr.mxu0 0.0
        %1801 = vmatpush1.msra.mxu0 0.0
        %1802 = vmatprep.subr.mxu0 0.0
        %1803 = vmatpush1.msra.mxu0 0.0
        %1804 = vmatprep.subr.mxu0 0.0
        %1805 = vmatpush1.msra.mxu0 0.0
        %1806 = vmatprep.subr.mxu0 0.0
        %1807 = vmatpush1.msra.mxu0 0.0
        %1808 = vmatprep.subr.mxu0 0.0
        %1809 = vmatpush1.msra.mxu0 0.0
        %1810 = vmatprep.subr.mxu0 0.0
        %1811 = vmatpush1.msra.mxu0 0.0
        %1812 = vmatprep.subr.mxu0 0.0
        %1813 = vmatpush1.msra.mxu0 0.0
        %1814 = vmatprep.subr.mxu0 0.0
        %1815 = vmatpush1.msra.mxu0 0.0
        %1816 = vmatprep.subr.mxu0 0.0
        %1817 = vmatpush1.msra.mxu0 0.0
        %1818 = vmatprep.subr.mxu0 0.0
        %1819 = vmatpush1.msra.mxu0 0.0
        %1820 = vmatprep.subr.mxu0 0.0
        %1821 = vmatpush1.msra.mxu0 0.0
        %1822 = vmatprep.subr.mxu0 0.0
        %1823 = vmatpush1.msra.mxu0 0.0
        %1824 = vmatprep.subr.mxu0 0.0
        %1825 = vmatpush1.msra.mxu0 0.0
        %1826 = vmatprep.subr.mxu0 0.0
        %1827 = vmatpush1.msra.mxu0 0.0
        %1828 = vmatprep.subr.mxu0 0.0
        %1829 = vmatpush1.msra.mxu0 0.0
        %1830 = vmatprep.subr.mxu0 0.0
        %1831 = vmatpush1.msra.mxu0 0.0
        %1832 = vmatprep.subr.mxu0 0.0
        %1833 = vmatpush1.msra.mxu0 0.0
        %1834 = vmatprep.subr.mxu0 0.0
        %1835 = vmatpush1.msra.mxu0 0.0
        %1836 = vmatprep.subr.mxu0 0.0
        %1837 = vmatpush1.msra.mxu0 0.0
        %1838 = vmatprep.subr.mxu0 0.0
        %1839 = vmatpush1.msra.mxu0 0.0
        %1840 = vmatprep.subr.mxu0 0.0
        %1841 = vmatpush1.msra.mxu0 0.0
        %1842 = vmatprep.subr.mxu0 0.0
        %1843 = vmatpush1.msra.mxu0 0.0
        %1844 = vmatprep.subr.mxu0 0.0
        %1845 = vmatpush1.msra.mxu0 0.0
        %1846 = vmatprep.subr.mxu0 0.0
        %1847 = vmatpush1.msra.mxu0 0.0
        %1848 = vmatprep.mubr.f32.mxu0 0.0
        %1849 = vmatmul.mubr.f32.gmra.mrb[0].mxu0 %v1782
        %v1850 = vpop.f32.mrb[0].mxu0
        %v1851 = vadd.f32 0.0, %v1850
        %v1852 = vpop.f32.mrb[0].mxu0
        %1853 = vdwg.mxu0
        %v1855 = vsel %vm1736, %v1778, 0
        %1857 = vmatprep.subr.mxu0 0.0
        %1858 = vmatpush1.msra.mxu0 %v1334
        %1859 = vmatprep.subr.mxu0 0.0
        %1860 = vmatpush1.msra.mxu0 %v1402
        %1861 = vmatprep.subr.mxu0 0.0
        %1862 = vmatpush1.msra.mxu0 0.0
        %1863 = vmatprep.subr.mxu0 0.0
        %1864 = vmatpush1.msra.mxu0 0.0
        %1865 = vmatprep.subr.mxu0 0.0
        %1866 = vmatpush1.msra.mxu0 0.0
        %1867 = vmatprep.subr.mxu0 0.0
        %1868 = vmatpush1.msra.mxu0 0.0
        %1869 = vmatprep.subr.mxu0 0.0
        %1870 = vmatpush1.msra.mxu0 0.0
        %1871 = vmatprep.subr.mxu0 0.0
        %1872 = vmatpush1.msra.mxu0 0.0
        %1873 = vmatprep.subr.mxu0 0.0
        %1874 = vmatpush1.msra.mxu0 0.0
        %1875 = vmatprep.subr.mxu0 0.0
        %1876 = vmatpush1.msra.mxu0 0.0
        %1877 = vmatprep.subr.mxu0 0.0
        %1878 = vmatpush1.msra.mxu0 0.0
        %1879 = vmatprep.subr.mxu0 0.0
        %1880 = vmatpush1.msra.mxu0 0.0
        %1881 = vmatprep.subr.mxu0 0.0
        %1882 = vmatpush1.msra.mxu0 0.0
        %1883 = vmatprep.subr.mxu0 0.0
        %1884 = vmatpush1.msra.mxu0 0.0
        %1885 = vmatprep.subr.mxu0 0.0
        %1886 = vmatpush1.msra.mxu0 0.0
        %1887 = vmatprep.subr.mxu0 0.0
        %1888 = vmatpush1.msra.mxu0 0.0
        %1889 = vmatprep.subr.mxu0 0.0
        %1890 = vmatpush1.msra.mxu0 0.0
        %1891 = vmatprep.subr.mxu0 0.0
        %1892 = vmatpush1.msra.mxu0 0.0
        %1893 = vmatprep.subr.mxu0 0.0
        %1894 = vmatpush1.msra.mxu0 0.0
        %1895 = vmatprep.subr.mxu0 0.0
        %1896 = vmatpush1.msra.mxu0 0.0
        %1897 = vmatprep.subr.mxu0 0.0
        %1898 = vmatpush1.msra.mxu0 0.0
        %1899 = vmatprep.subr.mxu0 0.0
        %1900 = vmatpush1.msra.mxu0 0.0
        %1901 = vmatprep.subr.mxu0 0.0
        %1902 = vmatpush1.msra.mxu0 0.0
        %1903 = vmatprep.subr.mxu0 0.0
        %1904 = vmatpush1.msra.mxu0 0.0
        %1905 = vmatprep.subr.mxu0 0.0
        %1906 = vmatpush1.msra.mxu0 0.0
        %1907 = vmatprep.subr.mxu0 0.0
        %1908 = vmatpush1.msra.mxu0 0.0
        %1909 = vmatprep.subr.mxu0 0.0
        %1910 = vmatpush1.msra.mxu0 0.0
        %1911 = vmatprep.subr.mxu0 0.0
        %1912 = vmatpush1.msra.mxu0 0.0
        %1913 = vmatprep.subr.mxu0 0.0
        %1914 = vmatpush1.msra.mxu0 0.0
        %1915 = vmatprep.subr.mxu0 0.0
        %1916 = vmatpush1.msra.mxu0 0.0
        %1917 = vmatprep.subr.mxu0 0.0
        %1918 = vmatpush1.msra.mxu0 0.0
        %1919 = vmatprep.subr.mxu0 0.0
        %1920 = vmatpush1.msra.mxu0 0.0
        %1921 = vmatprep.mubr.f32.mxu0 0.0
        %1922 = vmatmul.mubr.f32.gmra.mrb[0].mxu0 %v1855
        %v1923 = vpop.f32.mrb[0].mxu0
        %v1924 = vadd.f32 0.0, %v1923
        %v1925 = vpop.f32.mrb[0].mxu0
        %1926 = vdwg.mxu0
        %v1928 = vsel %vm1736, %v1779, 0
        %1930 = vmatprep.subr.mxu0 0.0
        %1931 = vmatpush1.msra.mxu0 %v1335
        %1932 = vmatprep.subr.mxu0 0.0
        %1933 = vmatpush1.msra.mxu0 %v1403
        %1934 = vmatprep.subr.mxu0 0.0
        %1935 = vmatpush1.msra.mxu0 0.0
        %1936 = vmatprep.subr.mxu0 0.0
        %1937 = vmatpush1.msra.mxu0 0.0
        %1938 = vmatprep.subr.mxu0 0.0
        %1939 = vmatpush1.msra.mxu0 0.0
        %1940 = vmatprep.subr.mxu0 0.0
        %1941 = vmatpush1.msra.mxu0 0.0
        %1942 = vmatprep.subr.mxu0 0.0
        %1943 = vmatpush1.msra.mxu0 0.0
        %1944 = vmatprep.subr.mxu0 0.0
        %1945 = vmatpush1.msra.mxu0 0.0
        %1946 = vmatprep.subr.mxu0 0.0
        %1947 = vmatpush1.msra.mxu0 0.0
        %1948 = vmatprep.subr.mxu0 0.0
        %1949 = vmatpush1.msra.mxu0 0.0
        %1950 = vmatprep.subr.mxu0 0.0
        %1951 = vmatpush1.msra.mxu0 0.0
        %1952 = vmatprep.subr.mxu0 0.0
        %1953 = vmatpush1.msra.mxu0 0.0
        %1954 = vmatprep.subr.mxu0 0.0
        %1955 = vmatpush1.msra.mxu0 0.0
        %1956 = vmatprep.subr.mxu0 0.0
        %1957 = vmatpush1.msra.mxu0 0.0
        %1958 = vmatprep.subr.mxu0 0.0
        %1959 = vmatpush1.msra.mxu0 0.0
        %1960 = vmatprep.subr.mxu0 0.0
        %1961 = vmatpush1.msra.mxu0 0.0
        %1962 = vmatprep.subr.mxu0 0.0
        %1963 = vmatpush1.msra.mxu0 0.0
        %1964 = vmatprep.subr.mxu0 0.0
        %1965 = vmatpush1.msra.mxu0 0.0
        %1966 = vmatprep.subr.mxu0 0.0
        %1967 = vmatpush1.msra.mxu0 0.0
        %1968 = vmatprep.subr.mxu0 0.0
        %1969 = vmatpush1.msra.mxu0 0.0
        %1970 = vmatprep.subr.mxu0 0.0
        %1971 = vmatpush1.msra.mxu0 0.0
        %1972 = vmatprep.subr.mxu0 0.0
        %1973 = vmatpush1.msra.mxu0 0.0
        %1974 = vmatprep.subr.mxu0 0.0
        %1975 = vmatpush1.msra.mxu0 0.0
        %1976 = vmatprep.subr.mxu0 0.0
        %1977 = vmatpush1.msra.mxu0 0.0
        %1978 = vmatprep.subr.mxu0 0.0
        %1979 = vmatpush1.msra.mxu0 0.0
        %1980 = vmatprep.subr.mxu0 0.0
        %1981 = vmatpush1.msra.mxu0 0.0
        %1982 = vmatprep.subr.mxu0 0.0
        %1983 = vmatpush1.msra.mxu0 0.0
        %1984 = vmatprep.subr.mxu0 0.0
        %1985 = vmatpush1.msra.mxu0 0.0
        %1986 = vmatprep.subr.mxu0 0.0
        %1987 = vmatpush1.msra.mxu0 0.0
        %1988 = vmatprep.subr.mxu0 0.0
        %1989 = vmatpush1.msra.mxu0 0.0
        %1990 = vmatprep.subr.mxu0 0.0
        %1991 = vmatpush1.msra.mxu0 0.0
        %1992 = vmatprep.subr.mxu0 0.0
        %1993 = vmatpush1.msra.mxu0 0.0
        %1994 = vmatprep.mubr.f32.mxu0 0.0
        %1995 = vmatmul.mubr.f32.gmra.mrb[0].mxu0 %v1928
        %v1996 = vpop.f32.mrb[0].mxu0
        %v1997 = vadd.f32 0.0, %v1996
        %v1998 = vpop.f32.mrb[0].mxu0
        %1999 = vdwg.mxu0
        %v2001 = vsel %vm1736, %v1780, 0
        %2003 = vmatprep.subr.mxu0 0.0
        %2004 = vmatpush1.msra.mxu0 %v1336
        %2005 = vmatprep.subr.mxu0 0.0
        %2006 = vmatpush1.msra.mxu0 %v1404
        %2007 = vmatprep.subr.mxu0 0.0
        %2008 = vmatpush1.msra.mxu0 0.0
        %2009 = vmatprep.subr.mxu0 0.0
        %2010 = vmatpush1.msra.mxu0 0.0
        %2011 = vmatprep.subr.mxu0 0.0
        %2012 = vmatpush1.msra.mxu0 0.0
        %2013 = vmatprep.subr.mxu0 0.0
        %2014 = vmatpush1.msra.mxu0 0.0
        %2015 = vmatprep.subr.mxu0 0.0
        %2016 = vmatpush1.msra.mxu0 0.0
        %2017 = vmatprep.subr.mxu0 0.0
        %2018 = vmatpush1.msra.mxu0 0.0
        %2019 = vmatprep.subr.mxu0 0.0
        %2020 = vmatpush1.msra.mxu0 0.0
        %2021 = vmatprep.subr.mxu0 0.0
        %2022 = vmatpush1.msra.mxu0 0.0
        %2023 = vmatprep.subr.mxu0 0.0
        %2024 = vmatpush1.msra.mxu0 0.0
        %2025 = vmatprep.subr.mxu0 0.0
        %2026 = vmatpush1.msra.mxu0 0.0
        %2027 = vmatprep.subr.mxu0 0.0
        %2028 = vmatpush1.msra.mxu0 0.0
        %2029 = vmatprep.subr.mxu0 0.0
        %2030 = vmatpush1.msra.mxu0 0.0
        %2031 = vmatprep.subr.mxu0 0.0
        %2032 = vmatpush1.msra.mxu0 0.0
        %2033 = vmatprep.subr.mxu0 0.0
        %2034 = vmatpush1.msra.mxu0 0.0
        %2035 = vmatprep.subr.mxu0 0.0
        %2036 = vmatpush1.msra.mxu0 0.0
        %2037 = vmatprep.subr.mxu0 0.0
        %2038 = vmatpush1.msra.mxu0 0.0
        %2039 = vmatprep.subr.mxu0 0.0
        %2040 = vmatpush1.msra.mxu0 0.0
        %2041 = vmatprep.subr.mxu0 0.0
        %2042 = vmatpush1.msra.mxu0 0.0
        %2043 = vmatprep.subr.mxu0 0.0
        %2044 = vmatpush1.msra.mxu0 0.0
        %2045 = vmatprep.subr.mxu0 0.0
        %2046 = vmatpush1.msra.mxu0 0.0
        %2047 = vmatprep.subr.mxu0 0.0
        %2048 = vmatpush1.msra.mxu0 0.0
        %2049 = vmatprep.subr.mxu0 0.0
        %2050 = vmatpush1.msra.mxu0 0.0
        %2051 = vmatprep.subr.mxu0 0.0
        %2052 = vmatpush1.msra.mxu0 0.0
        %2053 = vmatprep.subr.mxu0 0.0
        %2054 = vmatpush1.msra.mxu0 0.0
        %2055 = vmatprep.subr.mxu0 0.0
        %2056 = vmatpush1.msra.mxu0 0.0
        %2057 = vmatprep.subr.mxu0 0.0
        %2058 = vmatpush1.msra.mxu0 0.0
        %2059 = vmatprep.subr.mxu0 0.0
        %2060 = vmatpush1.msra.mxu0 0.0
        %2061 = vmatprep.subr.mxu0 0.0
        %2062 = vmatpush1.msra.mxu0 0.0
        %2063 = vmatprep.subr.mxu0 0.0
        %2064 = vmatpush1.msra.mxu0 0.0
        %2065 = vmatprep.subr.mxu0 0.0
        %2066 = vmatpush1.msra.mxu0 0.0
        %2067 = vmatprep.mubr.f32.mxu0 0.0
        %2068 = vmatmul.mubr.f32.gmra.mrb[0].mxu0 %v2001
        %v2069 = vpop.f32.mrb[0].mxu0
        %v2070 = vadd.f32 0.0, %v2069
        %v2071 = vpop.f32.mrb[0].mxu0
        %2072 = vdwg.mxu0
        %v2073 = vcombine.low %v1851, %v1997
        %v2074 = vcombine.high %v1851, %v1997
        %v2076 = vunpack.c.l.s4 1983009808
        %v2077 = vunpack.c.0.s8 %v2076
        %v2078 = vlaneseq
        %v2079 = vshrl.u32 %v2078, 7
        %v2080 = vsub.s32 %v2077, %v2079
        %v2081 = vrot.slane %v2073, %v2080
        %v2083 = vunpack.c.l.s4 1983009808
        %v2084 = vunpack.c.0.s8 %v2083
        %v2085 = vlaneseq
        %v2086 = vshrl.u32 %v2085, 7
        %v2087 = vsub.s32 %v2084, %v2086
        %v2088 = vrot.slane %v2074, %v2087
        %v2089 = vcombine.low %v1924, %v2070
        %v2090 = vcombine.high %v1924, %v2070
        %v2092 = vunpack.c.l.s4 1983009808
        %v2093 = vunpack.c.0.s8 %v2092
        %v2094 = vlaneseq
        %v2095 = vshrl.u32 %v2094, 7
        %v2096 = vsub.s32 %v2093, %v2095
        %v2097 = vrot.slane %v2089, %v2096
        %v2099 = vunpack.c.l.s4 1983009808
        %v2100 = vunpack.c.0.s8 %v2099
        %v2101 = vlaneseq
        %v2102 = vshrl.u32 %v2101, 7
        %v2103 = vsub.s32 %v2100, %v2102
        %v2104 = vrot.slane %v2090, %v2103
        %v2105 = vcombine.low %v2081, %v2097
        %v2106 = vcombine.high %v2081, %v2097
        %v2108 = vunpack.c.l.s4 1934713408
        %v2109 = vunpack.c.0.s8 %v2108
        %v2110 = vlaneseq
        %v2111 = vshrl.u32 %v2110, 7
        %v2112 = vsub.s32 %v2109, %v2111
        %v2113 = vrot.slane %v2105, %v2112
        %v2115 = vunpack.c.l.s4 1934713408
        %v2116 = vunpack.c.0.s8 %v2115
        %v2117 = vlaneseq
        %v2118 = vshrl.u32 %v2117, 7
        %v2119 = vsub.s32 %v2116, %v2118
        %v2120 = vrot.slane %v2106, %v2119
        %v2121 = vcombine.low %v2088, %v2104
        %v2122 = vcombine.high %v2088, %v2104
        %v2124 = vunpack.c.l.s4 1934713408
        %v2125 = vunpack.c.0.s8 %v2124
        %v2126 = vlaneseq
        %v2127 = vshrl.u32 %v2126, 7
        %v2128 = vsub.s32 %v2125, %v2127
        %v2129 = vrot.slane %v2121, %v2128
        %v2131 = vunpack.c.l.s4 1934713408
        %v2132 = vunpack.c.0.s8 %v2131
        %v2133 = vlaneseq
        %v2134 = vshrl.u32 %v2133, 7
        %v2135 = vsub.s32 %v2132, %v2134
        %v2136 = vrot.slane %v2122, %v2135
        %v2137 = vcombine.high %v2113, 0.0
        %v2138 = vcombine.high %v2120, 0.0
        %v2139 = vcombine.high %v2129, 0.0
        %v2140 = vcombine.high %v2136, 0.0
        %v2141 = vcombine.low %v2113, %v2120
        %v2143 = vunpack.c.l.s4 1983009808
        %v2144 = vunpack.c.0.s8 %v2143
        %v2145 = vlaneseq
        %v2146 = vshrl.u32 %v2145, 7
        %v2147 = vsub.s32 %v2144, %v2146
        %v2148 = vrot.slane %v2141, %v2147
        %v2149 = vcombine.low %v2137, %v2138
        %v2151 = vunpack.c.l.s4 1983009808
        %v2152 = vunpack.c.0.s8 %v2151
        %v2153 = vlaneseq
        %v2154 = vshrl.u32 %v2153, 7
        %v2155 = vsub.s32 %v2152, %v2154
        %v2156 = vrot.slane %v2149, %v2155
        %v2157 = vcombine.low %v2129, %v2136
        %v2159 = vunpack.c.l.s4 1983009808
        %v2160 = vunpack.c.0.s8 %v2159
        %v2161 = vlaneseq
        %v2162 = vshrl.u32 %v2161, 7
        %v2163 = vsub.s32 %v2160, %v2162
        %v2164 = vrot.slane %v2157, %v2163
        %v2165 = vcombine.low %v2139, %v2140
        %v2167 = vunpack.c.l.s4 1983009808
        %v2168 = vunpack.c.0.s8 %v2167
        %v2169 = vlaneseq
        %v2170 = vshrl.u32 %v2169, 7
        %v2171 = vsub.s32 %v2168, %v2170
        %v2172 = vrot.slane %v2165, %v2171
        %v2173 = vcombine.low %v2148, %v2156
        %v2174 = vcombine.high %v2148, %v2156
        %v2176 = vunpack.c.l.s4 1934713408
        %v2177 = vunpack.c.0.s8 %v2176
        %v2178 = vlaneseq
        %v2179 = vshrl.u32 %v2178, 7
        %v2180 = vsub.s32 %v2177, %v2179
        %v2181 = vrot.slane %v2173, %v2180
        %v2183 = vunpack.c.l.s4 1934713408
        %v2184 = vunpack.c.0.s8 %v2183
        %v2185 = vlaneseq
        %v2186 = vshrl.u32 %v2185, 7
        %v2187 = vsub.s32 %v2184, %v2186
        %v2188 = vrot.slane %v2174, %v2187
        %v2189 = vcombine.low %v2164, %v2172
        %v2190 = vcombine.high %v2164, %v2172
        %v2192 = vunpack.c.l.s4 1934713408
        %v2193 = vunpack.c.0.s8 %v2192
        %v2194 = vlaneseq
        %v2195 = vshrl.u32 %v2194, 7
        %v2196 = vsub.s32 %v2193, %v2195
        %v2197 = vrot.slane %v2189, %v2196
        %v2199 = vunpack.c.l.s4 1934713408
        %v2200 = vunpack.c.0.s8 %v2199
        %v2201 = vlaneseq
        %v2202 = vshrl.u32 %v2201, 7
        %v2203 = vsub.s32 %v2200, %v2202
        %v2204 = vrot.slane %v2190, %v2203
        %v2205 = vcombine.low %v2181, %v2197
        %v2206 = vcombine.high %v2181, %v2197
        %v2207 = vcombine.low %v2188, %v2204
        %v2208 = vcombine.high %v2188, %v2204
        %2210 = vrot.lane.b32.xlu0 %v2206, 32
        %v2211 = vpop.permute.xlu0 %2210
        %2214 = vrot.lane.b32.xlu0 %v2207, 64
        %v2215 = vpop.permute.xlu0 %2214
        %2218 = vrot.lane.b32.xlu0 %v2208, 96
        %v2219 = vpop.permute.xlu0 %2218
        %v2221 = vsel %vm1405, %v2205, %v2211
        %vm2222 = vcmask 523264
        %v2223 = vsel %vm2222, %v2221, %v2215
        %vm2224 = vcmask 785408
        %v2225 = vsel %vm2224, %v2223, %v2219
        %v2226 = vld [vmem:[#allocation12] sm:$0xff]
        %v2227 = vld [vmem:[#allocation12 + $0x8] sm:$0xff]
        %v2228 = vld [vmem:[#allocation12 + $0x10] sm:$0xff]
        %v2229 = vld [vmem:[#allocation12 + $0x18] sm:$0xff]
        %v2230 = vld [vmem:[#allocation12 + $0x20] sm:$0xff]
        %v2231 = vld [vmem:[#allocation12 + $0x28] sm:$0xff]
        %v2232 = vld [vmem:[#allocation12 + $0x30] sm:$0xff]
        %v2233 = vld [vmem:[#allocation12 + $0x38] sm:$0xff]
        %v2234 = vld [vmem:[#allocation12 + $0x40] sm:$0xff]
        %v2235 = vld [vmem:[#allocation12 + $0x48] sm:$0xff]
        %v2236 = vld [vmem:[#allocation12 + $0x50] sm:$0xff]
        %v2237 = vld [vmem:[#allocation12 + $0x58] sm:$0xff]
        %v2238 = vld [vmem:[#allocation12 + $0x60] sm:$0xff]
        %v2239 = vld [vmem:[#allocation12 + $0x68] sm:$0xff]
        %v2240 = vld [vmem:[#allocation12 + $0x70] sm:$0xff]
        %v2241 = vld [vmem:[#allocation12 + $0x78] sm:$0xff]
        %2242 = vmatprep.subr.mxu0 0.0
        %2243 = vmatpush1.msra.mxu0 %v2226
        %2244 = vmatprep.subr.mxu0 0.0
        %2245 = vmatpush1.msra.mxu0 %v2227
        %2246 = vmatprep.subr.mxu0 0.0
        %2247 = vmatpush1.msra.mxu0 %v2228
        %2248 = vmatprep.subr.mxu0 0.0
        %2249 = vmatpush1.msra.mxu0 %v2229
        %2250 = vmatprep.subr.mxu0 0.0
        %2251 = vmatpush1.msra.mxu0 %v2230
        %2252 = vmatprep.subr.mxu0 0.0
        %2253 = vmatpush1.msra.mxu0 %v2231
        %2254 = vmatprep.subr.mxu0 0.0
        %2255 = vmatpush1.msra.mxu0 %v2232
        %2256 = vmatprep.subr.mxu0 0.0
        %2257 = vmatpush1.msra.mxu0 %v2233
        %2258 = vmatprep.subr.mxu0 0.0
        %2259 = vmatpush1.msra.mxu0 %v2234
        %2260 = vmatprep.subr.mxu0 0.0
        %2261 = vmatpush1.msra.mxu0 %v2235
        %2262 = vmatprep.subr.mxu0 0.0
        %2263 = vmatpush1.msra.mxu0 %v2236
        %2264 = vmatprep.subr.mxu0 0.0
        %2265 = vmatpush1.msra.mxu0 %v2237
        %2266 = vmatprep.subr.mxu0 0.0
        %2267 = vmatpush1.msra.mxu0 %v2238
        %2268 = vmatprep.subr.mxu0 0.0
        %2269 = vmatpush1.msra.mxu0 %v2239
        %2270 = vmatprep.subr.mxu0 0.0
        %2271 = vmatpush1.msra.mxu0 %v2240
        %2272 = vmatprep.subr.mxu0 0.0
        %2273 = vmatpush1.msra.mxu0 %v2241
        %2274 = vmatprep.subr.mxu0 0.0
        %2275 = vmatpush1.msra.mxu0 0.0
        %2276 = vmatprep.subr.mxu0 0.0
        %2277 = vmatpush1.msra.mxu0 0.0
        %2278 = vmatprep.subr.mxu0 0.0
        %2279 = vmatpush1.msra.mxu0 0.0
        %2280 = vmatprep.subr.mxu0 0.0
        %2281 = vmatpush1.msra.mxu0 0.0
        %2282 = vmatprep.subr.mxu0 0.0
        %2283 = vmatpush1.msra.mxu0 0.0
        %2284 = vmatprep.subr.mxu0 0.0
        %2285 = vmatpush1.msra.mxu0 0.0
        %2286 = vmatprep.subr.mxu0 0.0
        %2287 = vmatpush1.msra.mxu0 0.0
        %2288 = vmatprep.subr.mxu0 0.0
        %2289 = vmatpush1.msra.mxu0 0.0
        %2290 = vmatprep.subr.mxu0 0.0
        %2291 = vmatpush1.msra.mxu0 0.0
        %2292 = vmatprep.subr.mxu0 0.0
        %2293 = vmatpush1.msra.mxu0 0.0
        %2294 = vmatprep.subr.mxu0 0.0
        %2295 = vmatpush1.msra.mxu0 0.0
        %2296 = vmatprep.subr.mxu0 0.0
        %2297 = vmatpush1.msra.mxu0 0.0
        %2298 = vmatprep.subr.mxu0 0.0
        %2299 = vmatpush1.msra.mxu0 0.0
        %2300 = vmatprep.subr.mxu0 0.0
        %2301 = vmatpush1.msra.mxu0 0.0
        %2302 = vmatprep.subr.mxu0 0.0
        %2303 = vmatpush1.msra.mxu0 0.0
        %2304 = vmatprep.subr.mxu0 0.0
        %2305 = vmatpush1.msra.mxu0 0.0
        %2306 = vmatprep.mubr.f32.mxu0 0.0
        %2307 = vmatmul.mubr.f32.gmra.mrb[0].mxu0 %v2225
        %v2308 = vpop.f32.mrb[0].mxu0
        %v2309 = vadd.f32 0.0, %v2308
        %v2310 = vpop.f32.mrb[0].mxu0
        %2311 = vdwg.mxu0
        %v2312 = vld [vmem:[%s347] sm:$0xff]
        %v2313 = vadd.f32 %v2312, %v2309
        %2314 = vst [vmem:[%s394] sm:$0xff] %v2313
        %s2315 = sand.u32 %s209, 1
        %s2316 = scalar_lea.sflag [#allocation6], %s2315
        %s2317 = sand.u32 %s209, 1
        %s2318 = smul.addr %s2317, 8
        %s2319 = scalar_lea.vmem [#allocation13], %s2318
        // Predicated region
        $region73: #{tpu_custom_call.1} parent=47 // pred_check
          %p2320 = pneg %p219
        $region74: #{tpu_custom_call.1} parent=47 // pred_check_branch
          %2322 = sbr.rel (%p2320) target = $region76
        $region75: #{tpu_custom_call.1} parent=47 // pred_region
          %s2324 = ssub.s32 128, 128
          %2325 = vsyncadd %s2316, %s2324
          %s2326 = smul.addr %s32, 2
          %s2327 = sadd.s32 %s33, %s2326
          %s2328 = smul.addr %s2327, 128
          %s2329 = scalar_lea.hbm %s7, %s2328
          %s2331 = sshll.u32 %s2319, 4
          %s2332 = int_to_ptr.vmem [resolvable:$true] %s2331
          %2334 = dma.vmem_to_hbm [thread:$0]  %s2332, 128, %s2329, %s2316
        $region76: #{tpu_custom_call.1} parent=47 // pred_fallthru
          _
      $region48: #{tpu_custom_call.1} parent=5 // pred_fallthru
        _
      %p2335 = scmp.le.s32.totalorder 2, %s23
      // Predicated region
      $region77: #{tpu_custom_call.1} parent=5 // pred_check
        %p2336 = pneg %p2335
      $region78: #{tpu_custom_call.1} parent=5 // pred_check_branch
        %2338 = sbr.rel (%p2336) target = $region80
      $region79: #{tpu_custom_call.1} parent=5 // pred_region
        %s2339 = ssub.s32 %s23, 2
        // Predicated region
        $region81: #{tpu_custom_call.1} parent=79 // pred_check
          %p2340 = pneg %p225
        $region82: #{tpu_custom_call.1} parent=79 // pred_check_branch
          %2342 = sbr.rel (%p2340) target = $region84
        $region83: #{tpu_custom_call.1} parent=79 // pred_region
          %s2343 = sand.u32 %s210, 1
          %s2344 = scalar_lea.sflag [#allocation6], %s2343
          %s2345 = sand.u32 %s210, 1
          %s2346 = smul.addr %s2345, 8
          %s2347 = scalar_lea.vmem [#allocation13], %s2346
          %2348 = dma.done %s2344, 128
        $region84: #{tpu_custom_call.1} parent=79 // pred_fallthru
          _
      $region80: #{tpu_custom_call.1} parent=5 // pred_fallthru
        _
    $region6: #{tpu_custom_call.1} parent=1 // loop_footer
      %s27 = sadd.s32 1, %s23
    $region7: #{tpu_custom_call.1} parent=1 // loop_footer_branch
      %22 = sbr.rel target = $region3
    $region8: #{tpu_custom_call.1} parent=1 // loop_exit
      _
    %2349 = vsyncpa [#allocation5], 1
    %s2350 = scalar_lea.sflag [#allocation5], 1
    %2351 = vsyncpa %s2350, 1
    %2352 = vsyncpa [#allocation8], 1
    %s2353 = scalar_lea.sflag [#allocation8], 1
    %2354 = vsyncpa %s2353, 1
    %2355 = vsyncpa [#allocation11], 1
    %2356 = vsyncpa [#allocation6], 1
    %s2357 = scalar_lea.sflag [#allocation6], 1
    %2358 = vsyncpa %s2357, 1

</llo_original>
